<compile_context>
chip_gen: v5e
topology: v5e:2x2
jax: 0.10.0
libtpu: 0.0.40
codegen_flags: <defaults>
</compile_context>

<pallas_src>
import functools
import math

import jax
import jax.numpy as jnp
from jax.experimental import pallas as pl
from jax.experimental.pallas import tpu as pltpu


# ----------------------------------------------------------------------------
# Fused decoder kernel
# ----------------------------------------------------------------------------
def _decoder_kernel(*refs, meta):
    """meta: tuple of (cin, cout, k, p_prev, is_last) for conv layers 1..L-1."""
    x_ref, w1_ref, b1_ref, wf_ref, bf_ref = refs[:5]
    o_ref = refs[-1]
    lrefs = refs[5:-1]
    f32 = jnp.float32

    # Linear1 + ReLU:  (B, enc) @ (enc, fc)
    h = jnp.dot(x_ref[...], w1_ref[...], preferred_element_type=f32) + b1_ref[...]
    h = jnp.maximum(h, 0.0)

    # Linear2 o Unflatten o ConvTranspose0, folded per output channel:
    #   plane[c] = h @ wf[c] + bf[c]   -> (B, P0),  P0 = k0*k0*y0*x0
    # (columns of each plane are ordered (ki0, kj0, i0, j0))
    n_ch0 = wf_ref.shape[0]
    planes = [jnp.dot(h, wf_ref[c], preferred_element_type=f32) + bf_ref[c]
              for c in range(n_ch0)]

    B = x_ref.shape[0]
    for li, (cin, cout, k, p_prev, is_last) in enumerate(meta):
        wsm_ref, bng_ref, bnb_ref, cb_ref = lrefs[4 * li:4 * li + 4]
        inv_n = 1.0 / float(B * p_prev)

        # BatchNorm2d (training-mode biased batch stats) + ReLU, per channel plane.
        normed = []
        for c in range(cin):
            y = planes[c]                                        # (B, p_prev)
            col = jnp.sum(y, axis=0, keepdims=True)              # (1, p_prev)
            mean = jnp.sum(col, axis=1, keepdims=True) * inv_n   # (1, 1)
            xc = y - mean
            vcol = jnp.sum(xc * xc, axis=0, keepdims=True)
            var = jnp.sum(vcol, axis=1, keepdims=True) * inv_n   # (1, 1)
            scale = bng_ref[c] * jax.lax.rsqrt(var + 1e-5)       # (1, 1)
            normed.append(jnp.maximum(xc * scale + bnb_ref[c], 0.0))

        # ConvTranspose2d with kernel_size == stride, padding 0:
        #   out block (co, ki, kj) = sum_c w[c, co, ki, kj] * normed[c] + b[co]
        # All blocks are contiguous (B, p_prev) slabs; weights are SMEM scalars.
        new_planes = []
        for co in range(cout):
            blocks = []
            for kk in range(k * k):
                acc = normed[0] * wsm_ref[0, co * k * k + kk]
                for c in range(1, cin):
                    acc = acc + normed[c] * wsm_ref[c, co * k * k + kk]
                acc = acc + cb_ref[co]
                if is_last:
                    o_ref[co * k * k + kk] = jax.nn.sigmoid(acc)
                else:
                    blocks.append(acc)
            if not is_last:
                # Intermediate layer: plane columns ordered (ki, kj, prev-spatial).
                new_planes.append(jnp.concatenate(blocks, axis=-1))
        planes = new_planes


# ----------------------------------------------------------------------------
# One-time weight preprocessing
# ----------------------------------------------------------------------------
def prepare_operands(params, cfg):
    """Fold Linear2 into ConvT0 (per channel) and flatten the small per-layer scalars."""
    # TODO(synk): only stride == kernel_size, padding = 0, output_padding = 0
    # ConvTranspose2d layers are modeled (as in the synthetic layer config).
    chan, y0, x0 = cfg["unflatten"]
    convs = cfg["convs"]
    fc = params["w1"].shape[1]
    f32 = jnp.float32

    w1 = params["w1"].astype(f32)                                 # (enc, fc)
    b1 = params["b1"].reshape(1, fc).astype(f32)
    w2 = params["w2"].astype(f32)                                 # (fc, chan*y0*x0)
    b2 = params["b2"].reshape(-1).astype(f32)

    cin0, cout0, k0 = convs[0]
    assert cin0 == chan
    p_in = y0 * x0
    w0 = params["convw0"].astype(f32)                             # (chan, cout0, k0, k0)
    b0 = params["convb0"].astype(f32)                             # (cout0,)
    w2r = w2.reshape(fc, chan, p_in)
    b2r = b2.reshape(chan, p_in)
    # Fused Linear2 o ConvT0 weight, per output channel; plane cols = (ki0, kj0, i0, j0).
    wf = jnp.einsum("fcp,coij->ofijp", w2r, w0).reshape(cout0, fc, k0 * k0 * p_in)
    bf = jnp.einsum("cp,coij->oijp", b2r, w0) + b0[:, None, None, None]
    bf = bf.reshape(cout0, 1, k0 * k0 * p_in)

    operands = [w1, b1, wf, bf]
    meta = []
    pix = k0 * k0 * p_in
    cprev = cout0
    n_layers = len(convs)
    for li in range(1, n_layers):
        cin, cout, k = convs[li]
        assert cin == cprev
        # Raw (tiny) per-layer scalars go to SMEM -- no kron / averaging-matrix densification.
        wsm = params[f"convw{li}"].astype(f32).reshape(cin, cout * k * k)
        bng = params[f"bng{li-1}"].astype(f32).reshape(cin)
        bnb = params[f"bnb{li-1}"].astype(f32).reshape(cin)
        cb = params[f"convb{li}"].astype(f32).reshape(cout)
        operands += [wsm, bng, bnb, cb]
        meta.append((cin, cout, k, pix, li == n_layers - 1))
        pix *= k * k
        cprev = cout
    return tuple(operands), tuple(meta)


def _unshuffle(out3d, cfg):
    """(C_last*K^2, B, P_prev) kernel output -> NCHW image (pure layout, jitted)."""
    chan, y0, x0 = cfg["unflatten"]
    convs = cfg["convs"]
    L = len(convs)
    ks = [k for (_, _, k) in convs]
    c_last = convs[-1][1]
    B = out3d.shape[1]
    dims = [c_last, ks[-1], ks[-1], B]
    for l in range(L - 2, -1, -1):
        dims += [ks[l], ks[l]]
    dims += [y0, x0]
    t = out3d.reshape(dims)
    ax_ki = {L - 1: 1}
    ax_kj = {L - 1: 2}
    pos = 4
    for l in range(L - 2, -1, -1):
        ax_ki[l] = pos
        ax_kj[l] = pos + 1
        pos += 2
    ax_i0, ax_j0 = pos, pos + 1
    perm = ([3, 0, ax_i0] + [ax_ki[l] for l in range(L)]
            + [ax_j0] + [ax_kj[l] for l in range(L)])
    t = jnp.transpose(t, perm)
    s = math.prod(ks)
    return t.reshape(B, c_last, y0 * s, x0 * s)


def make_decoder(params, cfg):
    operands, meta = prepare_operands(params, cfg)                # one-time prep
    kernel = functools.partial(_decoder_kernel, meta=meta)
    n_vmem_inputs = 5                                             # x, w1, b1, wf, bf
    n_smem_inputs = 4 * len(meta)
    _, cout_l, k_l, p_prev_l, _ = meta[-1]

    @jax.jit
    def fwd(x, *ops):
        b = x.shape[0]
        out3d = pl.pallas_call(
            kernel,
            out_shape=jax.ShapeDtypeStruct((cout_l * k_l * k_l, b, p_prev_l),
                                           jnp.float32),
            in_specs=([pl.BlockSpec(memory_space=pltpu.MemorySpace.VMEM)] * n_vmem_inputs
                      + [pl.BlockSpec(memory_space=pltpu.MemorySpace.SMEM)] * n_smem_inputs),
            out_specs=pl.BlockSpec(memory_space=pltpu.MemorySpace.VMEM),
        )(x, *ops)
        return _unshuffle(out3d, cfg)

    return lambda x: fwd(x, *operands)


# ----------------------------------------------------------------------------
# Pure-jnp reference (unfused math) for sanity checking
# ----------------------------------------------------------------------------
def decoder_reference(x, params, cfg):
    chan, y0, x0 = cfg["unflatten"]
    h = jnp.maximum(x @ params["w1"] + params["b1"], 0.0)
    h = h @ params["w2"] + params["b2"]
    img = jnp.transpose(h.reshape(x.shape[0], chan, y0, x0), (0, 2, 3, 1))  # NHWC
    n_layers = len(cfg["convs"])
    for li, (_, cout, k) in enumerate(cfg["convs"]):
        last = li == n_layers - 1
        w = params[f"convw{li}"]
        b = params[f"convb{li}"]
        y = jnp.einsum("nhwc,coij->nhiwjo", img, w)
        N, H, _, W, _, _ = y.shape
        img = y.reshape(N, H * k, W * k, cout) + b
        if last:
            img = jax.nn.sigmoid(img)
        else:
            mean = jnp.mean(img, axis=(0, 1, 2), keepdims=True)
            var = jnp.mean((img - mean) ** 2, axis=(0, 1, 2), keepdims=True)
            img = (img - mean) * jax.lax.rsqrt(var + 1e-5)
            img = jnp.maximum(img * params[f"bng{li}"] + params[f"bnb{li}"], 0.0)
    return jnp.transpose(img, (0, 3, 1, 2))


# ----------------------------------------------------------------------------
# Deterministic parameter init + driver
# ----------------------------------------------------------------------------
def make_params(key, cfg):
    enc, fc = cfg["encoded_space_dim"], cfg["fc_size"]
    chan, y0, x0 = cfg["unflatten"]
    keys = jax.random.split(key, 16)
    p = {
        "w1": 0.2 * jax.random.normal(keys[0], (enc, fc), jnp.float32),
        "b1": 0.1 * jax.random.normal(keys[1], (1, fc), jnp.float32),
        "w2": 0.2 * jax.random.normal(keys[2], (fc, chan * y0 * x0), jnp.float32),
        "b2": 0.1 * jax.random.normal(keys[3], (1, chan * y0 * x0), jnp.float32),
    }
    k = 4
    for li, (cin, cout, ksz) in enumerate(cfg["convs"]):
        p[f"convw{li}"] = 0.2 * jax.random.normal(keys[k], (cin, cout, ksz, ksz), jnp.float32)
        p[f"convb{li}"] = 0.1 * jax.random.normal(keys[k + 1], (cout,), jnp.float32)
        p[f"bng{li}"] = 1.0 + 0.1 * jax.random.normal(keys[k + 2], (cout,), jnp.float32)
        p[f"bnb{li}"] = 0.1 * jax.random.normal(keys[k + 3], (cout,), jnp.float32)
        k += 4
    return p


if __name__ == "__main__":
    # TODO(synk): BatchNorm2d uses batch statistics (fresh-module training-mode
    # forward); running-stat tracking / eval() mode is not modeled.
    cfg = {
        "encoded_space_dim": 4,
        "fc_size": 32,
        "unflatten": (8, 4, 4),                 # (chan, y, x) of layers[0] input
        "convs": [(8, 4, 2), (4, 3, 2)],        # (Cin, Cout, kernel=stride)
    }
    root = jax.random.PRNGKey(0)
    kp, kx = jax.random.split(root)
    params = make_params(kp, cfg)
    x = jax.random.normal(kx, (2, cfg["encoded_space_dim"]), jnp.float32)

    decoder = make_decoder(params, cfg)         # prep weights once + jit forward
    out = jax.block_until_ready(decoder(x))
    assert out.shape == (2, 3, 16, 16), out.shape

    ref = jax.block_until_ready(decoder_reference(x, params, cfg))
    assert jnp.allclose(out, ref, atol=5e-5, rtol=5e-5), float(jnp.abs(out - ref).max())

    print("KERNEL_OK")
</pallas_src>

<mosaic_0001>
module attributes {stable_mosaic.version = 11 : i64} {
  func.func @_decoder_kernel(%arg0: memref<2x4xf32, #tpu.memory_space<vmem>>, %arg1: memref<4x32xf32, #tpu.memory_space<vmem>>, %arg2: memref<1x32xf32, #tpu.memory_space<vmem>>, %arg3: memref<4x32x64xf32, #tpu.memory_space<vmem>>, %arg4: memref<4x1x64xf32, #tpu.memory_space<vmem>>, %arg5: memref<4x12xf32, #tpu.memory_space<smem>>, %arg6: memref<4xf32, #tpu.memory_space<smem>>, %arg7: memref<4xf32, #tpu.memory_space<smem>>, %arg8: memref<3xf32, #tpu.memory_space<smem>>, %arg9: memref<12x2x64xf32, #tpu.memory_space<vmem>>) attributes {dimension_semantics = [], scalar_prefetch = 0 : i64, scratch_operands = 0 : i64, tpu.core_type = #tpu.core_type<tc>} {
    %c0 = arith.constant 0 : index
    %c0_0 = arith.constant 0 : index
    %0 = vector.load %arg0[%c0, %c0_0] : memref<2x4xf32, #tpu.memory_space<vmem>>, vector<2x4xf32>
    %c0_1 = arith.constant 0 : index
    %c0_2 = arith.constant 0 : index
    %1 = vector.load %arg1[%c0_1, %c0_2] : memref<4x32xf32, #tpu.memory_space<vmem>>, vector<4x32xf32>
    %cst = arith.constant dense<0.000000e+00> : vector<2x32xf32>
    %2 = tpu.matmul %0, %1, %cst {dimension_numbers = #tpu.dot_dimension_numbers<[1], [0], [0], [1], [0, 0, 1, 1], [], []>} : vector<2x4xf32>, vector<4x32xf32>, vector<2x32xf32> -> vector<2x32xf32>
    %c0_3 = arith.constant 0 : index
    %c0_4 = arith.constant 0 : index
    %3 = vector.load %arg2[%c0_3, %c0_4] : memref<1x32xf32, #tpu.memory_space<vmem>>, vector<1x32xf32>
    %4 = vector.broadcast %3 : vector<1x32xf32> to vector<2x32xf32>
    %5 = arith.addf %2, %4 : vector<2x32xf32>
    %cst_5 = arith.constant 0.000000e+00 : f32
    %6 = vector.broadcast %cst_5 : f32 to vector<2x32xf32>
    %7 = arith.maximumf %5, %6 : vector<2x32xf32>
    %c0_6 = arith.constant 0 : index
    %c0_7 = arith.constant 0 : index
    %c0_8 = arith.constant 0 : index
    %8 = vector.load %arg3[%c0_6, %c0_7, %c0_8] : memref<4x32x64xf32, #tpu.memory_space<vmem>>, vector<1x32x64xf32>
    %9 = vector.shape_cast %8 : vector<1x32x64xf32> to vector<32x64xf32>
    %cst_9 = arith.constant dense<0.000000e+00> : vector<2x64xf32>
    %10 = tpu.matmul %7, %9, %cst_9 {dimension_numbers = #tpu.dot_dimension_numbers<[1], [0], [0], [1], [0, 0, 1, 1], [], []>} : vector<2x32xf32>, vector<32x64xf32>, vector<2x64xf32> -> vector<2x64xf32>
    %c0_10 = arith.constant 0 : index
    %c0_11 = arith.constant 0 : index
    %c0_12 = arith.constant 0 : index
    %11 = vector.load %arg4[%c0_10, %c0_11, %c0_12] : memref<4x1x64xf32, #tpu.memory_space<vmem>>, vector<1x1x64xf32>
    %12 = vector.shape_cast %11 : vector<1x1x64xf32> to vector<1x64xf32>
    %13 = vector.broadcast %12 : vector<1x64xf32> to vector<2x64xf32>
    %14 = arith.addf %10, %13 : vector<2x64xf32>
    %c1 = arith.constant 1 : index
    %c0_13 = arith.constant 0 : index
    %c0_14 = arith.constant 0 : index
    %15 = vector.load %arg3[%c1, %c0_13, %c0_14] : memref<4x32x64xf32, #tpu.memory_space<vmem>>, vector<1x32x64xf32>
    %16 = vector.shape_cast %15 : vector<1x32x64xf32> to vector<32x64xf32>
    %cst_15 = arith.constant dense<0.000000e+00> : vector<2x64xf32>
    %17 = tpu.matmul %7, %16, %cst_15 {dimension_numbers = #tpu.dot_dimension_numbers<[1], [0], [0], [1], [0, 0, 1, 1], [], []>} : vector<2x32xf32>, vector<32x64xf32>, vector<2x64xf32> -> vector<2x64xf32>
    %c1_16 = arith.constant 1 : index
    %c0_17 = arith.constant 0 : index
    %c0_18 = arith.constant 0 : index
    %18 = vector.load %arg4[%c1_16, %c0_17, %c0_18] : memref<4x1x64xf32, #tpu.memory_space<vmem>>, vector<1x1x64xf32>
    %19 = vector.shape_cast %18 : vector<1x1x64xf32> to vector<1x64xf32>
    %20 = vector.broadcast %19 : vector<1x64xf32> to vector<2x64xf32>
    %21 = arith.addf %17, %20 : vector<2x64xf32>
    %c2 = arith.constant 2 : index
    %c0_19 = arith.constant 0 : index
    %c0_20 = arith.constant 0 : index
    %22 = vector.load %arg3[%c2, %c0_19, %c0_20] : memref<4x32x64xf32, #tpu.memory_space<vmem>>, vector<1x32x64xf32>
    %23 = vector.shape_cast %22 : vector<1x32x64xf32> to vector<32x64xf32>
    %cst_21 = arith.constant dense<0.000000e+00> : vector<2x64xf32>
    %24 = tpu.matmul %7, %23, %cst_21 {dimension_numbers = #tpu.dot_dimension_numbers<[1], [0], [0], [1], [0, 0, 1, 1], [], []>} : vector<2x32xf32>, vector<32x64xf32>, vector<2x64xf32> -> vector<2x64xf32>
    %c2_22 = arith.constant 2 : index
    %c0_23 = arith.constant 0 : index
    %c0_24 = arith.constant 0 : index
    %25 = vector.load %arg4[%c2_22, %c0_23, %c0_24] : memref<4x1x64xf32, #tpu.memory_space<vmem>>, vector<1x1x64xf32>
    %26 = vector.shape_cast %25 : vector<1x1x64xf32> to vector<1x64xf32>
    %27 = vector.broadcast %26 : vector<1x64xf32> to vector<2x64xf32>
    %28 = arith.addf %24, %27 : vector<2x64xf32>
    %c3 = arith.constant 3 : index
    %c0_25 = arith.constant 0 : index
    %c0_26 = arith.constant 0 : index
    %29 = vector.load %arg3[%c3, %c0_25, %c0_26] : memref<4x32x64xf32, #tpu.memory_space<vmem>>, vector<1x32x64xf32>
    %30 = vector.shape_cast %29 : vector<1x32x64xf32> to vector<32x64xf32>
    %cst_27 = arith.constant dense<0.000000e+00> : vector<2x64xf32>
    %31 = tpu.matmul %7, %30, %cst_27 {dimension_numbers = #tpu.dot_dimension_numbers<[1], [0], [0], [1], [0, 0, 1, 1], [], []>} : vector<2x32xf32>, vector<32x64xf32>, vector<2x64xf32> -> vector<2x64xf32>
    %c3_28 = arith.constant 3 : index
    %c0_29 = arith.constant 0 : index
    %c0_30 = arith.constant 0 : index
    %32 = vector.load %arg4[%c3_28, %c0_29, %c0_30] : memref<4x1x64xf32, #tpu.memory_space<vmem>>, vector<1x1x64xf32>
    %33 = vector.shape_cast %32 : vector<1x1x64xf32> to vector<1x64xf32>
    %34 = vector.broadcast %33 : vector<1x64xf32> to vector<2x64xf32>
    %35 = arith.addf %31, %34 : vector<2x64xf32>
    %cst_31 = arith.constant dense<0.000000e+00> : vector<64xf32>
    %36 = vector.multi_reduction <add>, %14, %cst_31 [0] : vector<2x64xf32> to vector<64xf32>
    %37 = vector.shape_cast %36 : vector<64xf32> to vector<1x64xf32>
    %cst_32 = arith.constant dense<0.000000e+00> : vector<1xf32>
    %38 = vector.multi_reduction <add>, %37, %cst_32 [1] : vector<1x64xf32> to vector<1xf32>
    %39 = vector.shape_cast %38 : vector<1xf32> to vector<1x1xf32>
    %cst_33 = arith.constant 7.812500e-03 : f32
    %40 = vector.broadcast %cst_33 : f32 to vector<1x1xf32>
    %41 = arith.mulf %39, %40 : vector<1x1xf32>
    %42 = vector.broadcast %41 : vector<1x1xf32> to vector<2x64xf32>
    %43 = arith.subf %14, %42 : vector<2x64xf32>
    %44 = arith.mulf %43, %43 : vector<2x64xf32>
    %cst_34 = arith.constant dense<0.000000e+00> : vector<64xf32>
    %45 = vector.multi_reduction <add>, %44, %cst_34 [0] : vector<2x64xf32> to vector<64xf32>
    %46 = vector.shape_cast %45 : vector<64xf32> to vector<1x64xf32>
    %cst_35 = arith.constant dense<0.000000e+00> : vector<1xf32>
    %47 = vector.multi_reduction <add>, %46, %cst_35 [1] : vector<1x64xf32> to vector<1xf32>
    %48 = vector.shape_cast %47 : vector<1xf32> to vector<1x1xf32>
    %cst_36 = arith.constant 7.812500e-03 : f32
    %49 = vector.broadcast %cst_36 : f32 to vector<1x1xf32>
    %50 = arith.mulf %48, %49 : vector<1x1xf32>
    %c0_37 = arith.constant 0 : index
    %51 = memref.load %arg6[%c0_37] : memref<4xf32, #tpu.memory_space<smem>>
    %cst_38 = arith.constant 9.99999974E-6 : f32
    %52 = vector.broadcast %cst_38 : f32 to vector<1x1xf32>
    %53 = arith.addf %50, %52 : vector<1x1xf32>
    %54 = math.rsqrt %53 : vector<1x1xf32>
    %55 = vector.broadcast %51 : f32 to vector<1x1xf32>
    %56 = arith.mulf %55, %54 : vector<1x1xf32>
    %57 = vector.broadcast %56 : vector<1x1xf32> to vector<2x64xf32>
    %58 = arith.mulf %43, %57 : vector<2x64xf32>
    %c0_39 = arith.constant 0 : index
    %59 = memref.load %arg7[%c0_39] : memref<4xf32, #tpu.memory_space<smem>>
    %60 = vector.broadcast %59 : f32 to vector<2x64xf32>
    %61 = arith.addf %58, %60 : vector<2x64xf32>
    %cst_40 = arith.constant 0.000000e+00 : f32
    %62 = vector.broadcast %cst_40 : f32 to vector<2x64xf32>
    %63 = arith.maximumf %61, %62 : vector<2x64xf32>
    %cst_41 = arith.constant dense<0.000000e+00> : vector<64xf32>
    %64 = vector.multi_reduction <add>, %21, %cst_41 [0] : vector<2x64xf32> to vector<64xf32>
    %65 = vector.shape_cast %64 : vector<64xf32> to vector<1x64xf32>
    %cst_42 = arith.constant dense<0.000000e+00> : vector<1xf32>
    %66 = vector.multi_reduction <add>, %65, %cst_42 [1] : vector<1x64xf32> to vector<1xf32>
    %67 = vector.shape_cast %66 : vector<1xf32> to vector<1x1xf32>
    %cst_43 = arith.constant 7.812500e-03 : f32
    %68 = vector.broadcast %cst_43 : f32 to vector<1x1xf32>
    %69 = arith.mulf %67, %68 : vector<1x1xf32>
    %70 = vector.broadcast %69 : vector<1x1xf32> to vector<2x64xf32>
    %71 = arith.subf %21, %70 : vector<2x64xf32>
    %72 = arith.mulf %71, %71 : vector<2x64xf32>
    %cst_44 = arith.constant dense<0.000000e+00> : vector<64xf32>
    %73 = vector.multi_reduction <add>, %72, %cst_44 [0] : vector<2x64xf32> to vector<64xf32>
    %74 = vector.shape_cast %73 : vector<64xf32> to vector<1x64xf32>
    %cst_45 = arith.constant dense<0.000000e+00> : vector<1xf32>
    %75 = vector.multi_reduction <add>, %74, %cst_45 [1] : vector<1x64xf32> to vector<1xf32>
    %76 = vector.shape_cast %75 : vector<1xf32> to vector<1x1xf32>
    %cst_46 = arith.constant 7.812500e-03 : f32
    %77 = vector.broadcast %cst_46 : f32 to vector<1x1xf32>
    %78 = arith.mulf %76, %77 : vector<1x1xf32>
    %c1_47 = arith.constant 1 : index
    %79 = memref.load %arg6[%c1_47] : memref<4xf32, #tpu.memory_space<smem>>
    %cst_48 = arith.constant 9.99999974E-6 : f32
    %80 = vector.broadcast %cst_48 : f32 to vector<1x1xf32>
    %81 = arith.addf %78, %80 : vector<1x1xf32>
    %82 = math.rsqrt %81 : vector<1x1xf32>
    %83 = vector.broadcast %79 : f32 to vector<1x1xf32>
    %84 = arith.mulf %83, %82 : vector<1x1xf32>
    %85 = vector.broadcast %84 : vector<1x1xf32> to vector<2x64xf32>
    %86 = arith.mulf %71, %85 : vector<2x64xf32>
    %c1_49 = arith.constant 1 : index
    %87 = memref.load %arg7[%c1_49] : memref<4xf32, #tpu.memory_space<smem>>
    %88 = vector.broadcast %87 : f32 to vector<2x64xf32>
    %89 = arith.addf %86, %88 : vector<2x64xf32>
    %cst_50 = arith.constant 0.000000e+00 : f32
    %90 = vector.broadcast %cst_50 : f32 to vector<2x64xf32>
    %91 = arith.maximumf %89, %90 : vector<2x64xf32>
    %cst_51 = arith.constant dense<0.000000e+00> : vector<64xf32>
    %92 = vector.multi_reduction <add>, %28, %cst_51 [0] : vector<2x64xf32> to vector<64xf32>
    %93 = vector.shape_cast %92 : vector<64xf32> to vector<1x64xf32>
    %cst_52 = arith.constant dense<0.000000e+00> : vector<1xf32>
    %94 = vector.multi_reduction <add>, %93, %cst_52 [1] : vector<1x64xf32> to vector<1xf32>
    %95 = vector.shape_cast %94 : vector<1xf32> to vector<1x1xf32>
    %cst_53 = arith.constant 7.812500e-03 : f32
    %96 = vector.broadcast %cst_53 : f32 to vector<1x1xf32>
    %97 = arith.mulf %95, %96 : vector<1x1xf32>
    %98 = vector.broadcast %97 : vector<1x1xf32> to vector<2x64xf32>
    %99 = arith.subf %28, %98 : vector<2x64xf32>
    %100 = arith.mulf %99, %99 : vector<2x64xf32>
    %cst_54 = arith.constant dense<0.000000e+00> : vector<64xf32>
    %101 = vector.multi_reduction <add>, %100, %cst_54 [0] : vector<2x64xf32> to vector<64xf32>
    %102 = vector.shape_cast %101 : vector<64xf32> to vector<1x64xf32>
    %cst_55 = arith.constant dense<0.000000e+00> : vector<1xf32>
    %103 = vector.multi_reduction <add>, %102, %cst_55 [1] : vector<1x64xf32> to vector<1xf32>
    %104 = vector.shape_cast %103 : vector<1xf32> to vector<1x1xf32>
    %cst_56 = arith.constant 7.812500e-03 : f32
    %105 = vector.broadcast %cst_56 : f32 to vector<1x1xf32>
    %106 = arith.mulf %104, %105 : vector<1x1xf32>
    %c2_57 = arith.constant 2 : index
    %107 = memref.load %arg6[%c2_57] : memref<4xf32, #tpu.memory_space<smem>>
    %cst_58 = arith.constant 9.99999974E-6 : f32
    %108 = vector.broadcast %cst_58 : f32 to vector<1x1xf32>
    %109 = arith.addf %106, %108 : vector<1x1xf32>
    %110 = math.rsqrt %109 : vector<1x1xf32>
    %111 = vector.broadcast %107 : f32 to vector<1x1xf32>
    %112 = arith.mulf %111, %110 : vector<1x1xf32>
    %113 = vector.broadcast %112 : vector<1x1xf32> to vector<2x64xf32>
    %114 = arith.mulf %99, %113 : vector<2x64xf32>
    %c2_59 = arith.constant 2 : index
    %115 = memref.load %arg7[%c2_59] : memref<4xf32, #tpu.memory_space<smem>>
    %116 = vector.broadcast %115 : f32 to vector<2x64xf32>
    %117 = arith.addf %114, %116 : vector<2x64xf32>
    %cst_60 = arith.constant 0.000000e+00 : f32
    %118 = vector.broadcast %cst_60 : f32 to vector<2x64xf32>
    %119 = arith.maximumf %117, %118 : vector<2x64xf32>
    %cst_61 = arith.constant dense<0.000000e+00> : vector<64xf32>
    %120 = vector.multi_reduction <add>, %35, %cst_61 [0] : vector<2x64xf32> to vector<64xf32>
    %121 = vector.shape_cast %120 : vector<64xf32> to vector<1x64xf32>
    %cst_62 = arith.constant dense<0.000000e+00> : vector<1xf32>
    %122 = vector.multi_reduction <add>, %121, %cst_62 [1] : vector<1x64xf32> to vector<1xf32>
    %123 = vector.shape_cast %122 : vector<1xf32> to vector<1x1xf32>
    %cst_63 = arith.constant 7.812500e-03 : f32
    %124 = vector.broadcast %cst_63 : f32 to vector<1x1xf32>
    %125 = arith.mulf %123, %124 : vector<1x1xf32>
    %126 = vector.broadcast %125 : vector<1x1xf32> to vector<2x64xf32>
    %127 = arith.subf %35, %126 : vector<2x64xf32>
    %128 = arith.mulf %127, %127 : vector<2x64xf32>
    %cst_64 = arith.constant dense<0.000000e+00> : vector<64xf32>
    %129 = vector.multi_reduction <add>, %128, %cst_64 [0] : vector<2x64xf32> to vector<64xf32>
    %130 = vector.shape_cast %129 : vector<64xf32> to vector<1x64xf32>
    %cst_65 = arith.constant dense<0.000000e+00> : vector<1xf32>
    %131 = vector.multi_reduction <add>, %130, %cst_65 [1] : vector<1x64xf32> to vector<1xf32>
    %132 = vector.shape_cast %131 : vector<1xf32> to vector<1x1xf32>
    %cst_66 = arith.constant 7.812500e-03 : f32
    %133 = vector.broadcast %cst_66 : f32 to vector<1x1xf32>
    %134 = arith.mulf %132, %133 : vector<1x1xf32>
    %c3_67 = arith.constant 3 : index
    %135 = memref.load %arg6[%c3_67] : memref<4xf32, #tpu.memory_space<smem>>
    %cst_68 = arith.constant 9.99999974E-6 : f32
    %136 = vector.broadcast %cst_68 : f32 to vector<1x1xf32>
    %137 = arith.addf %134, %136 : vector<1x1xf32>
    %138 = math.rsqrt %137 : vector<1x1xf32>
    %139 = vector.broadcast %135 : f32 to vector<1x1xf32>
    %140 = arith.mulf %139, %138 : vector<1x1xf32>
    %141 = vector.broadcast %140 : vector<1x1xf32> to vector<2x64xf32>
    %142 = arith.mulf %127, %141 : vector<2x64xf32>
    %c3_69 = arith.constant 3 : index
    %143 = memref.load %arg7[%c3_69] : memref<4xf32, #tpu.memory_space<smem>>
    %144 = vector.broadcast %143 : f32 to vector<2x64xf32>
    %145 = arith.addf %142, %144 : vector<2x64xf32>
    %cst_70 = arith.constant 0.000000e+00 : f32
    %146 = vector.broadcast %cst_70 : f32 to vector<2x64xf32>
    %147 = arith.maximumf %145, %146 : vector<2x64xf32>
    %c0_71 = arith.constant 0 : index
    %c0_72 = arith.constant 0 : index
    %148 = memref.load %arg5[%c0_71, %c0_72] : memref<4x12xf32, #tpu.memory_space<smem>>
    %149 = vector.broadcast %148 : f32 to vector<2x64xf32>
    %150 = arith.mulf %63, %149 : vector<2x64xf32>
    %c1_73 = arith.constant 1 : index
    %c0_74 = arith.constant 0 : index
    %151 = memref.load %arg5[%c1_73, %c0_74] : memref<4x12xf32, #tpu.memory_space<smem>>
    %152 = vector.broadcast %151 : f32 to vector<2x64xf32>
    %153 = arith.mulf %91, %152 : vector<2x64xf32>
    %154 = arith.addf %150, %153 : vector<2x64xf32>
    %c2_75 = arith.constant 2 : index
    %c0_76 = arith.constant 0 : index
    %155 = memref.load %arg5[%c2_75, %c0_76] : memref<4x12xf32, #tpu.memory_space<smem>>
    %156 = vector.broadcast %155 : f32 to vector<2x64xf32>
    %157 = arith.mulf %119, %156 : vector<2x64xf32>
    %158 = arith.addf %154, %157 : vector<2x64xf32>
    %c3_77 = arith.constant 3 : index
    %c0_78 = arith.constant 0 : index
    %159 = memref.load %arg5[%c3_77, %c0_78] : memref<4x12xf32, #tpu.memory_space<smem>>
    %160 = vector.broadcast %159 : f32 to vector<2x64xf32>
    %161 = arith.mulf %147, %160 : vector<2x64xf32>
    %162 = arith.addf %158, %161 : vector<2x64xf32>
    %c0_79 = arith.constant 0 : index
    %163 = memref.load %arg8[%c0_79] : memref<3xf32, #tpu.memory_space<smem>>
    %164 = vector.broadcast %163 : f32 to vector<2x64xf32>
    %165 = arith.addf %162, %164 : vector<2x64xf32>
    %166 = arith.negf %165 : vector<2x64xf32>
    %167 = math.exp %166 : vector<2x64xf32>
    %cst_80 = arith.constant 1.000000e+00 : f32
    %168 = vector.broadcast %cst_80 : f32 to vector<2x64xf32>
    %169 = arith.addf %168, %167 : vector<2x64xf32>
    %170 = arith.divf %168, %169 : vector<2x64xf32>
    %c0_81 = arith.constant 0 : index
    %c0_82 = arith.constant 0 : index
    %c0_83 = arith.constant 0 : index
    %171 = vector.load %arg9[%c0_81, %c0_82, %c0_83] : memref<12x2x64xf32, #tpu.memory_space<vmem>>, vector<1x2x64xf32>
    %172 = vector.shape_cast %171 : vector<1x2x64xf32> to vector<2x64xf32>
    %173 = vector.shape_cast %170 : vector<2x64xf32> to vector<1x2x64xf32>
    tpu.vector_store %arg9[%c0_81, %c0_82, %c0_83], %173 {strides = array<i32>} : memref<12x2x64xf32, #tpu.memory_space<vmem>>, vector<1x2x64xf32>,
    %c0_84 = arith.constant 0 : index
    %c1_85 = arith.constant 1 : index
    %174 = memref.load %arg5[%c0_84, %c1_85] : memref<4x12xf32, #tpu.memory_space<smem>>
    %175 = vector.broadcast %174 : f32 to vector<2x64xf32>
    %176 = arith.mulf %63, %175 : vector<2x64xf32>
    %c1_86 = arith.constant 1 : index
    %c1_87 = arith.constant 1 : index
    %177 = memref.load %arg5[%c1_86, %c1_87] : memref<4x12xf32, #tpu.memory_space<smem>>
    %178 = vector.broadcast %177 : f32 to vector<2x64xf32>
    %179 = arith.mulf %91, %178 : vector<2x64xf32>
    %180 = arith.addf %176, %179 : vector<2x64xf32>
    %c2_88 = arith.constant 2 : index
    %c1_89 = arith.constant 1 : index
    %181 = memref.load %arg5[%c2_88, %c1_89] : memref<4x12xf32, #tpu.memory_space<smem>>
    %182 = vector.broadcast %181 : f32 to vector<2x64xf32>
    %183 = arith.mulf %119, %182 : vector<2x64xf32>
    %184 = arith.addf %180, %183 : vector<2x64xf32>
    %c3_90 = arith.constant 3 : index
    %c1_91 = arith.constant 1 : index
    %185 = memref.load %arg5[%c3_90, %c1_91] : memref<4x12xf32, #tpu.memory_space<smem>>
    %186 = vector.broadcast %185 : f32 to vector<2x64xf32>
    %187 = arith.mulf %147, %186 : vector<2x64xf32>
    %188 = arith.addf %184, %187 : vector<2x64xf32>
    %c0_92 = arith.constant 0 : index
    %189 = memref.load %arg8[%c0_92] : memref<3xf32, #tpu.memory_space<smem>>
    %190 = vector.broadcast %189 : f32 to vector<2x64xf32>
    %191 = arith.addf %188, %190 : vector<2x64xf32>
    %192 = arith.negf %191 : vector<2x64xf32>
    %193 = math.exp %192 : vector<2x64xf32>
    %cst_93 = arith.constant 1.000000e+00 : f32
    %194 = vector.broadcast %cst_93 : f32 to vector<2x64xf32>
    %195 = arith.addf %194, %193 : vector<2x64xf32>
    %196 = arith.divf %194, %195 : vector<2x64xf32>
    %c1_94 = arith.constant 1 : index
    %c0_95 = arith.constant 0 : index
    %c0_96 = arith.constant 0 : index
    %197 = vector.load %arg9[%c1_94, %c0_95, %c0_96] : memref<12x2x64xf32, #tpu.memory_space<vmem>>, vector<1x2x64xf32>
    %198 = vector.shape_cast %197 : vector<1x2x64xf32> to vector<2x64xf32>
    %199 = vector.shape_cast %196 : vector<2x64xf32> to vector<1x2x64xf32>
    tpu.vector_store %arg9[%c1_94, %c0_95, %c0_96], %199 {strides = array<i32>} : memref<12x2x64xf32, #tpu.memory_space<vmem>>, vector<1x2x64xf32>,
    %c0_97 = arith.constant 0 : index
    %c2_98 = arith.constant 2 : index
    %200 = memref.load %arg5[%c0_97, %c2_98] : memref<4x12xf32, #tpu.memory_space<smem>>
    %201 = vector.broadcast %200 : f32 to vector<2x64xf32>
    %202 = arith.mulf %63, %201 : vector<2x64xf32>
    %c1_99 = arith.constant 1 : index
    %c2_100 = arith.constant 2 : index
    %203 = memref.load %arg5[%c1_99, %c2_100] : memref<4x12xf32, #tpu.memory_space<smem>>
    %204 = vector.broadcast %203 : f32 to vector<2x64xf32>
    %205 = arith.mulf %91, %204 : vector<2x64xf32>
    %206 = arith.addf %202, %205 : vector<2x64xf32>
    %c2_101 = arith.constant 2 : index
    %c2_102 = arith.constant 2 : index
    %207 = memref.load %arg5[%c2_101, %c2_102] : memref<4x12xf32, #tpu.memory_space<smem>>
    %208 = vector.broadcast %207 : f32 to vector<2x64xf32>
    %209 = arith.mulf %119, %208 : vector<2x64xf32>
    %210 = arith.addf %206, %209 : vector<2x64xf32>
    %c3_103 = arith.constant 3 : index
    %c2_104 = arith.constant 2 : index
    %211 = memref.load %arg5[%c3_103, %c2_104] : memref<4x12xf32, #tpu.memory_space<smem>>
    %212 = vector.broadcast %211 : f32 to vector<2x64xf32>
    %213 = arith.mulf %147, %212 : vector<2x64xf32>
    %214 = arith.addf %210, %213 : vector<2x64xf32>
    %c0_105 = arith.constant 0 : index
    %215 = memref.load %arg8[%c0_105] : memref<3xf32, #tpu.memory_space<smem>>
    %216 = vector.broadcast %215 : f32 to vector<2x64xf32>
    %217 = arith.addf %214, %216 : vector<2x64xf32>
    %218 = arith.negf %217 : vector<2x64xf32>
    %219 = math.exp %218 : vector<2x64xf32>
    %cst_106 = arith.constant 1.000000e+00 : f32
    %220 = vector.broadcast %cst_106 : f32 to vector<2x64xf32>
    %221 = arith.addf %220, %219 : vector<2x64xf32>
    %222 = arith.divf %220, %221 : vector<2x64xf32>
    %c2_107 = arith.constant 2 : index
    %c0_108 = arith.constant 0 : index
    %c0_109 = arith.constant 0 : index
    %223 = vector.load %arg9[%c2_107, %c0_108, %c0_109] : memref<12x2x64xf32, #tpu.memory_space<vmem>>, vector<1x2x64xf32>
    %224 = vector.shape_cast %223 : vector<1x2x64xf32> to vector<2x64xf32>
    %225 = vector.shape_cast %222 : vector<2x64xf32> to vector<1x2x64xf32>
    tpu.vector_store %arg9[%c2_107, %c0_108, %c0_109], %225 {strides = array<i32>} : memref<12x2x64xf32, #tpu.memory_space<vmem>>, vector<1x2x64xf32>,
    %c0_110 = arith.constant 0 : index
    %c3_111 = arith.constant 3 : index
    %226 = memref.load %arg5[%c0_110, %c3_111] : memref<4x12xf32, #tpu.memory_space<smem>>
    %227 = vector.broadcast %226 : f32 to vector<2x64xf32>
    %228 = arith.mulf %63, %227 : vector<2x64xf32>
    %c1_112 = arith.constant 1 : index
    %c3_113 = arith.constant 3 : index
    %229 = memref.load %arg5[%c1_112, %c3_113] : memref<4x12xf32, #tpu.memory_space<smem>>
    %230 = vector.broadcast %229 : f32 to vector<2x64xf32>
    %231 = arith.mulf %91, %230 : vector<2x64xf32>
    %232 = arith.addf %228, %231 : vector<2x64xf32>
    %c2_114 = arith.constant 2 : index
    %c3_115 = arith.constant 3 : index
    %233 = memref.load %arg5[%c2_114, %c3_115] : memref<4x12xf32, #tpu.memory_space<smem>>
    %234 = vector.broadcast %233 : f32 to vector<2x64xf32>
    %235 = arith.mulf %119, %234 : vector<2x64xf32>
    %236 = arith.addf %232, %235 : vector<2x64xf32>
    %c3_116 = arith.constant 3 : index
    %c3_117 = arith.constant 3 : index
    %237 = memref.load %arg5[%c3_116, %c3_117] : memref<4x12xf32, #tpu.memory_space<smem>>
    %238 = vector.broadcast %237 : f32 to vector<2x64xf32>
    %239 = arith.mulf %147, %238 : vector<2x64xf32>
    %240 = arith.addf %236, %239 : vector<2x64xf32>
    %c0_118 = arith.constant 0 : index
    %241 = memref.load %arg8[%c0_118] : memref<3xf32, #tpu.memory_space<smem>>
    %242 = vector.broadcast %241 : f32 to vector<2x64xf32>
    %243 = arith.addf %240, %242 : vector<2x64xf32>
    %244 = arith.negf %243 : vector<2x64xf32>
    %245 = math.exp %244 : vector<2x64xf32>
    %cst_119 = arith.constant 1.000000e+00 : f32
    %246 = vector.broadcast %cst_119 : f32 to vector<2x64xf32>
    %247 = arith.addf %246, %245 : vector<2x64xf32>
    %248 = arith.divf %246, %247 : vector<2x64xf32>
    %c3_120 = arith.constant 3 : index
    %c0_121 = arith.constant 0 : index
    %c0_122 = arith.constant 0 : index
    %249 = vector.load %arg9[%c3_120, %c0_121, %c0_122] : memref<12x2x64xf32, #tpu.memory_space<vmem>>, vector<1x2x64xf32>
    %250 = vector.shape_cast %249 : vector<1x2x64xf32> to vector<2x64xf32>
    %251 = vector.shape_cast %248 : vector<2x64xf32> to vector<1x2x64xf32>
    tpu.vector_store %arg9[%c3_120, %c0_121, %c0_122], %251 {strides = array<i32>} : memref<12x2x64xf32, #tpu.memory_space<vmem>>, vector<1x2x64xf32>,
    %c0_123 = arith.constant 0 : index
    %c4 = arith.constant 4 : index
    %252 = memref.load %arg5[%c0_123, %c4] : memref<4x12xf32, #tpu.memory_space<smem>>
    %253 = vector.broadcast %252 : f32 to vector<2x64xf32>
    %254 = arith.mulf %63, %253 : vector<2x64xf32>
    %c1_124 = arith.constant 1 : index
    %c4_125 = arith.constant 4 : index
    %255 = memref.load %arg5[%c1_124, %c4_125] : memref<4x12xf32, #tpu.memory_space<smem>>
    %256 = vector.broadcast %255 : f32 to vector<2x64xf32>
    %257 = arith.mulf %91, %256 : vector<2x64xf32>
    %258 = arith.addf %254, %257 : vector<2x64xf32>
    %c2_126 = arith.constant 2 : index
    %c4_127 = arith.constant 4 : index
    %259 = memref.load %arg5[%c2_126, %c4_127] : memref<4x12xf32, #tpu.memory_space<smem>>
    %260 = vector.broadcast %259 : f32 to vector<2x64xf32>
    %261 = arith.mulf %119, %260 : vector<2x64xf32>
    %262 = arith.addf %258, %261 : vector<2x64xf32>
    %c3_128 = arith.constant 3 : index
    %c4_129 = arith.constant 4 : index
    %263 = memref.load %arg5[%c3_128, %c4_129] : memref<4x12xf32, #tpu.memory_space<smem>>
    %264 = vector.broadcast %263 : f32 to vector<2x64xf32>
    %265 = arith.mulf %147, %264 : vector<2x64xf32>
    %266 = arith.addf %262, %265 : vector<2x64xf32>
    %c1_130 = arith.constant 1 : index
    %267 = memref.load %arg8[%c1_130] : memref<3xf32, #tpu.memory_space<smem>>
    %268 = vector.broadcast %267 : f32 to vector<2x64xf32>
    %269 = arith.addf %266, %268 : vector<2x64xf32>
    %270 = arith.negf %269 : vector<2x64xf32>
    %271 = math.exp %270 : vector<2x64xf32>
    %cst_131 = arith.constant 1.000000e+00 : f32
    %272 = vector.broadcast %cst_131 : f32 to vector<2x64xf32>
    %273 = arith.addf %272, %271 : vector<2x64xf32>
    %274 = arith.divf %272, %273 : vector<2x64xf32>
    %c4_132 = arith.constant 4 : index
    %c0_133 = arith.constant 0 : index
    %c0_134 = arith.constant 0 : index
    %275 = vector.load %arg9[%c4_132, %c0_133, %c0_134] : memref<12x2x64xf32, #tpu.memory_space<vmem>>, vector<1x2x64xf32>
    %276 = vector.shape_cast %275 : vector<1x2x64xf32> to vector<2x64xf32>
    %277 = vector.shape_cast %274 : vector<2x64xf32> to vector<1x2x64xf32>
    tpu.vector_store %arg9[%c4_132, %c0_133, %c0_134], %277 {strides = array<i32>} : memref<12x2x64xf32, #tpu.memory_space<vmem>>, vector<1x2x64xf32>,
    %c0_135 = arith.constant 0 : index
    %c5 = arith.constant 5 : index
    %278 = memref.load %arg5[%c0_135, %c5] : memref<4x12xf32, #tpu.memory_space<smem>>
    %279 = vector.broadcast %278 : f32 to vector<2x64xf32>
    %280 = arith.mulf %63, %279 : vector<2x64xf32>
    %c1_136 = arith.constant 1 : index
    %c5_137 = arith.constant 5 : index
    %281 = memref.load %arg5[%c1_136, %c5_137] : memref<4x12xf32, #tpu.memory_space<smem>>
    %282 = vector.broadcast %281 : f32 to vector<2x64xf32>
    %283 = arith.mulf %91, %282 : vector<2x64xf32>
    %284 = arith.addf %280, %283 : vector<2x64xf32>
    %c2_138 = arith.constant 2 : index
    %c5_139 = arith.constant 5 : index
    %285 = memref.load %arg5[%c2_138, %c5_139] : memref<4x12xf32, #tpu.memory_space<smem>>
    %286 = vector.broadcast %285 : f32 to vector<2x64xf32>
    %287 = arith.mulf %119, %286 : vector<2x64xf32>
    %288 = arith.addf %284, %287 : vector<2x64xf32>
    %c3_140 = arith.constant 3 : index
    %c5_141 = arith.constant 5 : index
    %289 = memref.load %arg5[%c3_140, %c5_141] : memref<4x12xf32, #tpu.memory_space<smem>>
    %290 = vector.broadcast %289 : f32 to vector<2x64xf32>
    %291 = arith.mulf %147, %290 : vector<2x64xf32>
    %292 = arith.addf %288, %291 : vector<2x64xf32>
    %c1_142 = arith.constant 1 : index
    %293 = memref.load %arg8[%c1_142] : memref<3xf32, #tpu.memory_space<smem>>
    %294 = vector.broadcast %293 : f32 to vector<2x64xf32>
    %295 = arith.addf %292, %294 : vector<2x64xf32>
    %296 = arith.negf %295 : vector<2x64xf32>
    %297 = math.exp %296 : vector<2x64xf32>
    %cst_143 = arith.constant 1.000000e+00 : f32
    %298 = vector.broadcast %cst_143 : f32 to vector<2x64xf32>
    %299 = arith.addf %298, %297 : vector<2x64xf32>
    %300 = arith.divf %298, %299 : vector<2x64xf32>
    %c5_144 = arith.constant 5 : index
    %c0_145 = arith.constant 0 : index
    %c0_146 = arith.constant 0 : index
    %301 = vector.load %arg9[%c5_144, %c0_145, %c0_146] : memref<12x2x64xf32, #tpu.memory_space<vmem>>, vector<1x2x64xf32>
    %302 = vector.shape_cast %301 : vector<1x2x64xf32> to vector<2x64xf32>
    %303 = vector.shape_cast %300 : vector<2x64xf32> to vector<1x2x64xf32>
    tpu.vector_store %arg9[%c5_144, %c0_145, %c0_146], %303 {strides = array<i32>} : memref<12x2x64xf32, #tpu.memory_space<vmem>>, vector<1x2x64xf32>,
    %c0_147 = arith.constant 0 : index
    %c6 = arith.constant 6 : index
    %304 = memref.load %arg5[%c0_147, %c6] : memref<4x12xf32, #tpu.memory_space<smem>>
    %305 = vector.broadcast %304 : f32 to vector<2x64xf32>
    %306 = arith.mulf %63, %305 : vector<2x64xf32>
    %c1_148 = arith.constant 1 : index
    %c6_149 = arith.constant 6 : index
    %307 = memref.load %arg5[%c1_148, %c6_149] : memref<4x12xf32, #tpu.memory_space<smem>>
    %308 = vector.broadcast %307 : f32 to vector<2x64xf32>
    %309 = arith.mulf %91, %308 : vector<2x64xf32>
    %310 = arith.addf %306, %309 : vector<2x64xf32>
    %c2_150 = arith.constant 2 : index
    %c6_151 = arith.constant 6 : index
    %311 = memref.load %arg5[%c2_150, %c6_151] : memref<4x12xf32, #tpu.memory_space<smem>>
    %312 = vector.broadcast %311 : f32 to vector<2x64xf32>
    %313 = arith.mulf %119, %312 : vector<2x64xf32>
    %314 = arith.addf %310, %313 : vector<2x64xf32>
    %c3_152 = arith.constant 3 : index
    %c6_153 = arith.constant 6 : index
    %315 = memref.load %arg5[%c3_152, %c6_153] : memref<4x12xf32, #tpu.memory_space<smem>>
    %316 = vector.broadcast %315 : f32 to vector<2x64xf32>
    %317 = arith.mulf %147, %316 : vector<2x64xf32>
    %318 = arith.addf %314, %317 : vector<2x64xf32>
    %c1_154 = arith.constant 1 : index
    %319 = memref.load %arg8[%c1_154] : memref<3xf32, #tpu.memory_space<smem>>
    %320 = vector.broadcast %319 : f32 to vector<2x64xf32>
    %321 = arith.addf %318, %320 : vector<2x64xf32>
    %322 = arith.negf %321 : vector<2x64xf32>
    %323 = math.exp %322 : vector<2x64xf32>
    %cst_155 = arith.constant 1.000000e+00 : f32
    %324 = vector.broadcast %cst_155 : f32 to vector<2x64xf32>
    %325 = arith.addf %324, %323 : vector<2x64xf32>
    %326 = arith.divf %324, %325 : vector<2x64xf32>
    %c6_156 = arith.constant 6 : index
    %c0_157 = arith.constant 0 : index
    %c0_158 = arith.constant 0 : index
    %327 = vector.load %arg9[%c6_156, %c0_157, %c0_158] : memref<12x2x64xf32, #tpu.memory_space<vmem>>, vector<1x2x64xf32>
    %328 = vector.shape_cast %327 : vector<1x2x64xf32> to vector<2x64xf32>
    %329 = vector.shape_cast %326 : vector<2x64xf32> to vector<1x2x64xf32>
    tpu.vector_store %arg9[%c6_156, %c0_157, %c0_158], %329 {strides = array<i32>} : memref<12x2x64xf32, #tpu.memory_space<vmem>>, vector<1x2x64xf32>,
    %c0_159 = arith.constant 0 : index
    %c7 = arith.constant 7 : index
    %330 = memref.load %arg5[%c0_159, %c7] : memref<4x12xf32, #tpu.memory_space<smem>>
    %331 = vector.broadcast %330 : f32 to vector<2x64xf32>
    %332 = arith.mulf %63, %331 : vector<2x64xf32>
    %c1_160 = arith.constant 1 : index
    %c7_161 = arith.constant 7 : index
    %333 = memref.load %arg5[%c1_160, %c7_161] : memref<4x12xf32, #tpu.memory_space<smem>>
    %334 = vector.broadcast %333 : f32 to vector<2x64xf32>
    %335 = arith.mulf %91, %334 : vector<2x64xf32>
    %336 = arith.addf %332, %335 : vector<2x64xf32>
    %c2_162 = arith.constant 2 : index
    %c7_163 = arith.constant 7 : index
    %337 = memref.load %arg5[%c2_162, %c7_163] : memref<4x12xf32, #tpu.memory_space<smem>>
    %338 = vector.broadcast %337 : f32 to vector<2x64xf32>
    %339 = arith.mulf %119, %338 : vector<2x64xf32>
    %340 = arith.addf %336, %339 : vector<2x64xf32>
    %c3_164 = arith.constant 3 : index
    %c7_165 = arith.constant 7 : index
    %341 = memref.load %arg5[%c3_164, %c7_165] : memref<4x12xf32, #tpu.memory_space<smem>>
    %342 = vector.broadcast %341 : f32 to vector<2x64xf32>
    %343 = arith.mulf %147, %342 : vector<2x64xf32>
    %344 = arith.addf %340, %343 : vector<2x64xf32>
    %c1_166 = arith.constant 1 : index
    %345 = memref.load %arg8[%c1_166] : memref<3xf32, #tpu.memory_space<smem>>
    %346 = vector.broadcast %345 : f32 to vector<2x64xf32>
    %347 = arith.addf %344, %346 : vector<2x64xf32>
    %348 = arith.negf %347 : vector<2x64xf32>
    %349 = math.exp %348 : vector<2x64xf32>
    %cst_167 = arith.constant 1.000000e+00 : f32
    %350 = vector.broadcast %cst_167 : f32 to vector<2x64xf32>
    %351 = arith.addf %350, %349 : vector<2x64xf32>
    %352 = arith.divf %350, %351 : vector<2x64xf32>
    %c7_168 = arith.constant 7 : index
    %c0_169 = arith.constant 0 : index
    %c0_170 = arith.constant 0 : index
    %353 = vector.load %arg9[%c7_168, %c0_169, %c0_170] : memref<12x2x64xf32, #tpu.memory_space<vmem>>, vector<1x2x64xf32>
    %354 = vector.shape_cast %353 : vector<1x2x64xf32> to vector<2x64xf32>
    %355 = vector.shape_cast %352 : vector<2x64xf32> to vector<1x2x64xf32>
    tpu.vector_store %arg9[%c7_168, %c0_169, %c0_170], %355 {strides = array<i32>} : memref<12x2x64xf32, #tpu.memory_space<vmem>>, vector<1x2x64xf32>,
    %c0_171 = arith.constant 0 : index
    %c8 = arith.constant 8 : index
    %356 = memref.load %arg5[%c0_171, %c8] : memref<4x12xf32, #tpu.memory_space<smem>>
    %357 = vector.broadcast %356 : f32 to vector<2x64xf32>
    %358 = arith.mulf %63, %357 : vector<2x64xf32>
    %c1_172 = arith.constant 1 : index
    %c8_173 = arith.constant 8 : index
    %359 = memref.load %arg5[%c1_172, %c8_173] : memref<4x12xf32, #tpu.memory_space<smem>>
    %360 = vector.broadcast %359 : f32 to vector<2x64xf32>
    %361 = arith.mulf %91, %360 : vector<2x64xf32>
    %362 = arith.addf %358, %361 : vector<2x64xf32>
    %c2_174 = arith.constant 2 : index
    %c8_175 = arith.constant 8 : index
    %363 = memref.load %arg5[%c2_174, %c8_175] : memref<4x12xf32, #tpu.memory_space<smem>>
    %364 = vector.broadcast %363 : f32 to vector<2x64xf32>
    %365 = arith.mulf %119, %364 : vector<2x64xf32>
    %366 = arith.addf %362, %365 : vector<2x64xf32>
    %c3_176 = arith.constant 3 : index
    %c8_177 = arith.constant 8 : index
    %367 = memref.load %arg5[%c3_176, %c8_177] : memref<4x12xf32, #tpu.memory_space<smem>>
    %368 = vector.broadcast %367 : f32 to vector<2x64xf32>
    %369 = arith.mulf %147, %368 : vector<2x64xf32>
    %370 = arith.addf %366, %369 : vector<2x64xf32>
    %c2_178 = arith.constant 2 : index
    %371 = memref.load %arg8[%c2_178] : memref<3xf32, #tpu.memory_space<smem>>
    %372 = vector.broadcast %371 : f32 to vector<2x64xf32>
    %373 = arith.addf %370, %372 : vector<2x64xf32>
    %374 = arith.negf %373 : vector<2x64xf32>
    %375 = math.exp %374 : vector<2x64xf32>
    %cst_179 = arith.constant 1.000000e+00 : f32
    %376 = vector.broadcast %cst_179 : f32 to vector<2x64xf32>
    %377 = arith.addf %376, %375 : vector<2x64xf32>
    %378 = arith.divf %376, %377 : vector<2x64xf32>
    %c8_180 = arith.constant 8 : index
    %c0_181 = arith.constant 0 : index
    %c0_182 = arith.constant 0 : index
    %379 = vector.load %arg9[%c8_180, %c0_181, %c0_182] : memref<12x2x64xf32, #tpu.memory_space<vmem>>, vector<1x2x64xf32>
    %380 = vector.shape_cast %379 : vector<1x2x64xf32> to vector<2x64xf32>
    %381 = vector.shape_cast %378 : vector<2x64xf32> to vector<1x2x64xf32>
    tpu.vector_store %arg9[%c8_180, %c0_181, %c0_182], %381 {strides = array<i32>} : memref<12x2x64xf32, #tpu.memory_space<vmem>>, vector<1x2x64xf32>,
    %c0_183 = arith.constant 0 : index
    %c9 = arith.constant 9 : index
    %382 = memref.load %arg5[%c0_183, %c9] : memref<4x12xf32, #tpu.memory_space<smem>>
    %383 = vector.broadcast %382 : f32 to vector<2x64xf32>
    %384 = arith.mulf %63, %383 : vector<2x64xf32>
    %c1_184 = arith.constant 1 : index
    %c9_185 = arith.constant 9 : index
    %385 = memref.load %arg5[%c1_184, %c9_185] : memref<4x12xf32, #tpu.memory_space<smem>>
    %386 = vector.broadcast %385 : f32 to vector<2x64xf32>
    %387 = arith.mulf %91, %386 : vector<2x64xf32>
    %388 = arith.addf %384, %387 : vector<2x64xf32>
    %c2_186 = arith.constant 2 : index
    %c9_187 = arith.constant 9 : index
    %389 = memref.load %arg5[%c2_186, %c9_187] : memref<4x12xf32, #tpu.memory_space<smem>>
    %390 = vector.broadcast %389 : f32 to vector<2x64xf32>
    %391 = arith.mulf %119, %390 : vector<2x64xf32>
    %392 = arith.addf %388, %391 : vector<2x64xf32>
    %c3_188 = arith.constant 3 : index
    %c9_189 = arith.constant 9 : index
    %393 = memref.load %arg5[%c3_188, %c9_189] : memref<4x12xf32, #tpu.memory_space<smem>>
    %394 = vector.broadcast %393 : f32 to vector<2x64xf32>
    %395 = arith.mulf %147, %394 : vector<2x64xf32>
    %396 = arith.addf %392, %395 : vector<2x64xf32>
    %c2_190 = arith.constant 2 : index
    %397 = memref.load %arg8[%c2_190] : memref<3xf32, #tpu.memory_space<smem>>
    %398 = vector.broadcast %397 : f32 to vector<2x64xf32>
    %399 = arith.addf %396, %398 : vector<2x64xf32>
    %400 = arith.negf %399 : vector<2x64xf32>
    %401 = math.exp %400 : vector<2x64xf32>
    %cst_191 = arith.constant 1.000000e+00 : f32
    %402 = vector.broadcast %cst_191 : f32 to vector<2x64xf32>
    %403 = arith.addf %402, %401 : vector<2x64xf32>
    %404 = arith.divf %402, %403 : vector<2x64xf32>
    %c9_192 = arith.constant 9 : index
    %c0_193 = arith.constant 0 : index
    %c0_194 = arith.constant 0 : index
    %405 = vector.load %arg9[%c9_192, %c0_193, %c0_194] : memref<12x2x64xf32, #tpu.memory_space<vmem>>, vector<1x2x64xf32>
    %406 = vector.shape_cast %405 : vector<1x2x64xf32> to vector<2x64xf32>
    %407 = vector.shape_cast %404 : vector<2x64xf32> to vector<1x2x64xf32>
    tpu.vector_store %arg9[%c9_192, %c0_193, %c0_194], %407 {strides = array<i32>} : memref<12x2x64xf32, #tpu.memory_space<vmem>>, vector<1x2x64xf32>,
    %c0_195 = arith.constant 0 : index
    %c10 = arith.constant 10 : index
    %408 = memref.load %arg5[%c0_195, %c10] : memref<4x12xf32, #tpu.memory_space<smem>>
    %409 = vector.broadcast %408 : f32 to vector<2x64xf32>
    %410 = arith.mulf %63, %409 : vector<2x64xf32>
    %c1_196 = arith.constant 1 : index
    %c10_197 = arith.constant 10 : index
    %411 = memref.load %arg5[%c1_196, %c10_197] : memref<4x12xf32, #tpu.memory_space<smem>>
    %412 = vector.broadcast %411 : f32 to vector<2x64xf32>
    %413 = arith.mulf %91, %412 : vector<2x64xf32>
    %414 = arith.addf %410, %413 : vector<2x64xf32>
    %c2_198 = arith.constant 2 : index
    %c10_199 = arith.constant 10 : index
    %415 = memref.load %arg5[%c2_198, %c10_199] : memref<4x12xf32, #tpu.memory_space<smem>>
    %416 = vector.broadcast %415 : f32 to vector<2x64xf32>
    %417 = arith.mulf %119, %416 : vector<2x64xf32>
    %418 = arith.addf %414, %417 : vector<2x64xf32>
    %c3_200 = arith.constant 3 : index
    %c10_201 = arith.constant 10 : index
    %419 = memref.load %arg5[%c3_200, %c10_201] : memref<4x12xf32, #tpu.memory_space<smem>>
    %420 = vector.broadcast %419 : f32 to vector<2x64xf32>
    %421 = arith.mulf %147, %420 : vector<2x64xf32>
    %422 = arith.addf %418, %421 : vector<2x64xf32>
    %c2_202 = arith.constant 2 : index
    %423 = memref.load %arg8[%c2_202] : memref<3xf32, #tpu.memory_space<smem>>
    %424 = vector.broadcast %423 : f32 to vector<2x64xf32>
    %425 = arith.addf %422, %424 : vector<2x64xf32>
    %426 = arith.negf %425 : vector<2x64xf32>
    %427 = math.exp %426 : vector<2x64xf32>
    %cst_203 = arith.constant 1.000000e+00 : f32
    %428 = vector.broadcast %cst_203 : f32 to vector<2x64xf32>
    %429 = arith.addf %428, %427 : vector<2x64xf32>
    %430 = arith.divf %428, %429 : vector<2x64xf32>
    %c10_204 = arith.constant 10 : index
    %c0_205 = arith.constant 0 : index
    %c0_206 = arith.constant 0 : index
    %431 = vector.load %arg9[%c10_204, %c0_205, %c0_206] : memref<12x2x64xf32, #tpu.memory_space<vmem>>, vector<1x2x64xf32>
    %432 = vector.shape_cast %431 : vector<1x2x64xf32> to vector<2x64xf32>
    %433 = vector.shape_cast %430 : vector<2x64xf32> to vector<1x2x64xf32>
    tpu.vector_store %arg9[%c10_204, %c0_205, %c0_206], %433 {strides = array<i32>} : memref<12x2x64xf32, #tpu.memory_space<vmem>>, vector<1x2x64xf32>,
    %c0_207 = arith.constant 0 : index
    %c11 = arith.constant 11 : index
    %434 = memref.load %arg5[%c0_207, %c11] : memref<4x12xf32, #tpu.memory_space<smem>>
    %435 = vector.broadcast %434 : f32 to vector<2x64xf32>
    %436 = arith.mulf %63, %435 : vector<2x64xf32>
    %c1_208 = arith.constant 1 : index
    %c11_209 = arith.constant 11 : index
    %437 = memref.load %arg5[%c1_208, %c11_209] : memref<4x12xf32, #tpu.memory_space<smem>>
    %438 = vector.broadcast %437 : f32 to vector<2x64xf32>
    %439 = arith.mulf %91, %438 : vector<2x64xf32>
    %440 = arith.addf %436, %439 : vector<2x64xf32>
    %c2_210 = arith.constant 2 : index
    %c11_211 = arith.constant 11 : index
    %441 = memref.load %arg5[%c2_210, %c11_211] : memref<4x12xf32, #tpu.memory_space<smem>>
    %442 = vector.broadcast %441 : f32 to vector<2x64xf32>
    %443 = arith.mulf %119, %442 : vector<2x64xf32>
    %444 = arith.addf %440, %443 : vector<2x64xf32>
    %c3_212 = arith.constant 3 : index
    %c11_213 = arith.constant 11 : index
    %445 = memref.load %arg5[%c3_212, %c11_213] : memref<4x12xf32, #tpu.memory_space<smem>>
    %446 = vector.broadcast %445 : f32 to vector<2x64xf32>
    %447 = arith.mulf %147, %446 : vector<2x64xf32>
    %448 = arith.addf %444, %447 : vector<2x64xf32>
    %c2_214 = arith.constant 2 : index
    %449 = memref.load %arg8[%c2_214] : memref<3xf32, #tpu.memory_space<smem>>
    %450 = vector.broadcast %449 : f32 to vector<2x64xf32>
    %451 = arith.addf %448, %450 : vector<2x64xf32>
    %452 = arith.negf %451 : vector<2x64xf32>
    %453 = math.exp %452 : vector<2x64xf32>
    %cst_215 = arith.constant 1.000000e+00 : f32
    %454 = vector.broadcast %cst_215 : f32 to vector<2x64xf32>
    %455 = arith.addf %454, %453 : vector<2x64xf32>
    %456 = arith.divf %454, %455 : vector<2x64xf32>
    %c11_216 = arith.constant 11 : index
    %c0_217 = arith.constant 0 : index
    %c0_218 = arith.constant 0 : index
    %457 = vector.load %arg9[%c11_216, %c0_217, %c0_218] : memref<12x2x64xf32, #tpu.memory_space<vmem>>, vector<1x2x64xf32>
    %458 = vector.shape_cast %457 : vector<1x2x64xf32> to vector<2x64xf32>
    %459 = vector.shape_cast %456 : vector<2x64xf32> to vector<1x2x64xf32>
    tpu.vector_store %arg9[%c11_216, %c0_217, %c0_218], %459 {strides = array<i32>} : memref<12x2x64xf32, #tpu.memory_space<vmem>>, vector<1x2x64xf32>,
    return
  }
}

</mosaic_0001>

<llo_original>
// kernel: fwd.1
$region0: #{fwd.1}
  #allocation0 [shape = 'u32[]', space=smem, size = 0x4, offset = 0x4, fixed_abs, tag = 'smem constant byte address 0x4 - core index']
  #allocation1 [shape = 'u32[72,128]{1,0:T(1,128)}', space=vmem, size = 0x9000, scoped, tag = 'internal scratch']
  %s0 = inlined_call_operand.hbm [shape: f32[2,4], index: 0, kind: input, shape index: {}]
  %s1 = inlined_call_operand.hbm [shape: f32[4,32], index: 1, kind: input, shape index: {}]
  %s2 = inlined_call_operand.hbm [shape: f32[1,32], index: 2, kind: input, shape index: {}]
  %s3 = inlined_call_operand.hbm [shape: f32[4,32,64], index: 3, kind: input, shape index: {}]
  %s4 = inlined_call_operand.hbm [shape: f32[4,1,64], index: 4, kind: input, shape index: {}]
  %s5 = inlined_call_operand.vmem [shape: f32[4,12], index: 5, kind: input, shape index: {}]
  %s6 = inlined_call_operand.vmem [shape: f32[4], index: 6, kind: input, shape index: {}]
  %s7 = inlined_call_operand.vmem [shape: f32[4], index: 7, kind: input, shape index: {}]
  %s8 = inlined_call_operand.vmem [shape: f32[3], index: 8, kind: input, shape index: {}]
  %s9 = inlined_call_operand.vmem [shape: f32[12,2,64], index: 9, kind: output, shape index: {}]
  %s10 = sld [smem:[#allocation0]]
  $region82: #{fwd.1} parent=0
    _
  %s12 = ssub.s32 1, %s10
  %s13 = scalar_select 0, %s12, %s10
  $region1: #{fwd.1} parent=0
    #allocation2 [shape = 'u8[1024]{0}', space=vmem, size = 0x400, scoped, tag = 'input window, operand 0, single buffered']
    #allocation3 [shape = 's32[1]{0}', space=sflag, size = 0x4, scoped, tag = 'scoped memory for fwd.1']
    #allocation4 [shape = 's32[1]{0}', space=sflag, size = 0x4, scoped, tag = 'scoped memory for fwd.1']
    #allocation5 [shape = 'u8[2048]{0}', space=vmem, size = 0x800, scoped, tag = 'input window, operand 1, single buffered']
    #allocation6 [shape = 's32[1]{0}', space=sflag, size = 0x4, scoped, tag = 'scoped memory for fwd.1']
    #allocation7 [shape = 'u8[512]{0}', space=vmem, size = 0x400, scoped, tag = 'input window, operand 2, single buffered']
    #allocation8 [shape = 'u8[65536]{0}', space=vmem, size = 0x10000, scoped, tag = 'input window, operand 3, single buffered']
    #allocation9 [shape = 's32[1]{0}', space=sflag, size = 0x4, scoped, tag = 'scoped memory for fwd.1']
    #allocation10 [shape = 'u8[2048]{0}', space=vmem, size = 0x800, scoped, tag = 'input window, operand 4, single buffered']
    #allocation11 [shape = 'u8[2048]{0}', space=smem, size = 0x800, scoped, tag = 'input window, operand 5, single buffered']
    #allocation12 [shape = 'u8[512]{0}', space=smem, size = 0x200, scoped, tag = 'input window, operand 6, single buffered']
    #allocation13 [shape = 's32[1]{0}', space=sflag, size = 0x4, scoped, tag = 'scoped memory for fwd.1']
    #allocation14 [shape = 'u8[512]{0}', space=smem, size = 0x200, scoped, tag = 'input window, operand 7, single buffered']
    #allocation15 [shape = 'u8[512]{0}', space=smem, size = 0x200, scoped, tag = 'input window, operand 8, single buffered']
    #allocation16 [shape = 's32[1]{0}', space=sflag, size = 0x4, scoped, tag = 'scoped memory for fwd.1']
    %14 = vsyncpa [#allocation3], 0
    %15 = vsyncpa [#allocation6], 0
    %16 = vsyncpa [#allocation9], 0
    %17 = vsyncpa [#allocation4], 0
    %18 = vsyncpa [#allocation13], 0
    %19 = vsyncpa [#allocation16], 0
    // Predicated region
    $region2: #{fwd.1} parent=1 // pred_check
      _
    $region3: #{fwd.1} parent=1 // pred_check_branch
      %21 = sbr.rel (0) target = $region5
    $region4: #{fwd.1} parent=1 // pred_region
      %23 = vsyncadd [#allocation3], 0
      %s25 = sshll.u32 %s0, 4
      %s26 = int_to_ptr.hbm [resolvable:$true] %s25
      %s27 = sshll.u32 [#allocation2], 4
      %s28 = int_to_ptr.vmem [resolvable:$true] %s27
      %30 = dma.hbm_to_vmem [thread:$0]  %s26, 32, %s28, [#allocation3]
    $region5: #{fwd.1} parent=1 // pred_fallthru
      _
    // Predicated region
    $region6: #{fwd.1} parent=1 // pred_check
      _
    $region7: #{fwd.1} parent=1 // pred_check_branch
      %32 = sbr.rel (0) target = $region9
    $region8: #{fwd.1} parent=1 // pred_region
      %34 = vsyncadd [#allocation6], 0
      %s36 = sshll.u32 %s1, 4
      %s37 = int_to_ptr.hbm [resolvable:$true] %s36
      %s38 = sshll.u32 [#allocation5], 4
      %s39 = int_to_ptr.vmem [resolvable:$true] %s38
      %41 = dma.hbm_to_vmem [thread:$0]  %s37, 64, %s39, [#allocation6]
    $region9: #{fwd.1} parent=1 // pred_fallthru
      _
    // Predicated region
    $region10: #{fwd.1} parent=1 // pred_check
      _
    $region11: #{fwd.1} parent=1 // pred_check_branch
      %43 = sbr.rel (0) target = $region13
    $region12: #{fwd.1} parent=1 // pred_region
      %45 = vsyncadd [#allocation6], 0
      %s47 = sshll.u32 %s2, 4
      %s48 = int_to_ptr.hbm [resolvable:$true] %s47
      %s49 = sshll.u32 [#allocation7], 4
      %s50 = int_to_ptr.vmem [resolvable:$true] %s49
      %52 = dma.hbm_to_vmem [thread:$0]  %s48, 16, %s50, [#allocation6]
    $region13: #{fwd.1} parent=1 // pred_fallthru
      _
    // Predicated region
    $region14: #{fwd.1} parent=1 // pred_check
      _
    $region15: #{fwd.1} parent=1 // pred_check_branch
      %54 = sbr.rel (0) target = $region17
    $region16: #{fwd.1} parent=1 // pred_region
      %56 = vsyncadd [#allocation9], 0
      %s57 = sshll.u32 %s3, 4
      %s58 = int_to_ptr.hbm [resolvable:$true] %s57
      %s59 = sshll.u32 [#allocation8], 4
      %s60 = int_to_ptr.vmem [resolvable:$true] %s59
      %65 = dma.hbm_to_vmem [thread:$0]  %s58, 2048, %s60, [#allocation9], 128, 128, 8
    $region17: #{fwd.1} parent=1 // pred_fallthru
      _
    // Predicated region
    $region18: #{fwd.1} parent=1 // pred_check
      _
    $region19: #{fwd.1} parent=1 // pred_check_branch
      %67 = sbr.rel (0) target = $region21
    $region20: #{fwd.1} parent=1 // pred_region
      %69 = vsyncadd [#allocation9], 0
      %s70 = sshll.u32 %s4, 4
      %s71 = int_to_ptr.hbm [resolvable:$true] %s70
      %s72 = sshll.u32 [#allocation10], 4
      %s73 = int_to_ptr.vmem [resolvable:$true] %s72
      %78 = dma.hbm_to_vmem [thread:$0]  %s71, 64, %s73, [#allocation9], 16, 16, 1
    $region21: #{fwd.1} parent=1 // pred_fallthru
      _
    // Predicated region
    $region22: #{fwd.1} parent=1 // pred_check
      _
    $region23: #{fwd.1} parent=1 // pred_check_branch
      %80 = sbr.rel (0) target = $region25
    $region24: #{fwd.1} parent=1 // pred_region
      %82 = vsyncadd [#allocation4], 0
      %s84 = sshll.u32 %s5, 4
      %s85 = int_to_ptr.vmem [resolvable:$true] %s84
      %87 = dma.vmem_to_smem %s85, 64, [#allocation11], [#allocation4]
    $region25: #{fwd.1} parent=1 // pred_fallthru
      _
    // Predicated region
    $region26: #{fwd.1} parent=1 // pred_check
      _
    $region27: #{fwd.1} parent=1 // pred_check_branch
      %89 = sbr.rel (0) target = $region29
    $region28: #{fwd.1} parent=1 // pred_region
      %91 = vsyncadd [#allocation13], 0
      %s93 = sshll.u32 %s6, 4
      %s94 = int_to_ptr.vmem [resolvable:$true] %s93
      %96 = dma.vmem_to_smem %s94, 16, [#allocation12], [#allocation13]
    $region29: #{fwd.1} parent=1 // pred_fallthru
      _
    // Predicated region
    $region30: #{fwd.1} parent=1 // pred_check
      _
    $region31: #{fwd.1} parent=1 // pred_check_branch
      %98 = sbr.rel (0) target = $region33
    $region32: #{fwd.1} parent=1 // pred_region
      %100 = vsyncadd [#allocation13], 0
      %s102 = sshll.u32 %s7, 4
      %s103 = int_to_ptr.vmem [resolvable:$true] %s102
      %105 = dma.vmem_to_smem %s103, 16, [#allocation14], [#allocation13]
    $region33: #{fwd.1} parent=1 // pred_fallthru
      _
    // Predicated region
    $region34: #{fwd.1} parent=1 // pred_check
      _
    $region35: #{fwd.1} parent=1 // pred_check_branch
      %107 = sbr.rel (0) target = $region37
    $region36: #{fwd.1} parent=1 // pred_region
      %109 = vsyncadd [#allocation16], 0
      %s111 = sshll.u32 %s8, 4
      %s112 = int_to_ptr.vmem [resolvable:$true] %s111
      %114 = dma.vmem_to_smem %s112, 16, [#allocation15], [#allocation16]
    $region37: #{fwd.1} parent=1 // pred_fallthru
      _
    // Predicated region
    $region38: #{fwd.1} parent=1 // pred_check
      _
    $region39: #{fwd.1} parent=1 // pred_check_branch
      %116 = sbr.rel (0) target = $region41
    $region40: #{fwd.1} parent=1 // pred_region
      %118 = dma.done [#allocation3], 32
    $region41: #{fwd.1} parent=1 // pred_fallthru
      _
    // Predicated region
    $region42: #{fwd.1} parent=1 // pred_check
      _
    $region43: #{fwd.1} parent=1 // pred_check_branch
      %120 = sbr.rel (0) target = $region45
    $region44: #{fwd.1} parent=1 // pred_region
      %122 = dma.done [#allocation6], 64
    $region45: #{fwd.1} parent=1 // pred_fallthru
      _
    // Predicated region
    $region46: #{fwd.1} parent=1 // pred_check
      _
    $region47: #{fwd.1} parent=1 // pred_check_branch
      %124 = sbr.rel (0) target = $region49
    $region48: #{fwd.1} parent=1 // pred_region
      %126 = dma.done [#allocation6], 16
    $region49: #{fwd.1} parent=1 // pred_fallthru
      _
    // Predicated region
    $region50: #{fwd.1} parent=1 // pred_check
      _
    $region51: #{fwd.1} parent=1 // pred_check_branch
      %128 = sbr.rel (0) target = $region53
    $region52: #{fwd.1} parent=1 // pred_region
      %130 = dma.done [#allocation9], 2048
    $region53: #{fwd.1} parent=1 // pred_fallthru
      _
    // Predicated region
    $region54: #{fwd.1} parent=1 // pred_check
      _
    $region55: #{fwd.1} parent=1 // pred_check_branch
      %132 = sbr.rel (0) target = $region57
    $region56: #{fwd.1} parent=1 // pred_region
      %134 = dma.done [#allocation9], 64
    $region57: #{fwd.1} parent=1 // pred_fallthru
      _
    // Predicated region
    $region58: #{fwd.1} parent=1 // pred_check
      _
    $region59: #{fwd.1} parent=1 // pred_check_branch
      %136 = sbr.rel (0) target = $region61
    $region60: #{fwd.1} parent=1 // pred_region
      %138 = dma.done [#allocation4], 64
    $region61: #{fwd.1} parent=1 // pred_fallthru
      _
    // Predicated region
    $region62: #{fwd.1} parent=1 // pred_check
      _
    $region63: #{fwd.1} parent=1 // pred_check_branch
      %140 = sbr.rel (0) target = $region65
    $region64: #{fwd.1} parent=1 // pred_region
      %142 = dma.done [#allocation13], 16
    $region65: #{fwd.1} parent=1 // pred_fallthru
      _
    // Predicated region
    $region66: #{fwd.1} parent=1 // pred_check
      _
    $region67: #{fwd.1} parent=1 // pred_check_branch
      %144 = sbr.rel (0) target = $region69
    $region68: #{fwd.1} parent=1 // pred_region
      %146 = dma.done [#allocation13], 16
    $region69: #{fwd.1} parent=1 // pred_fallthru
      _
    // Predicated region
    $region70: #{fwd.1} parent=1 // pred_check
      _
    $region71: #{fwd.1} parent=1 // pred_check_branch
      %148 = sbr.rel (0) target = $region73
    $region72: #{fwd.1} parent=1 // pred_region
      %150 = dma.done [#allocation16], 16
    $region73: #{fwd.1} parent=1 // pred_fallthru
      _
    %151 = sfence
    %v152 = vld [vmem:[#allocation2] sm:$0x3]
    %v153 = vld [vmem:[#allocation5] sm:$0xf]
    %v154 = vld [vmem:[#allocation7] sm:$0x1]
    %v156 = vperm.slane %v154, 0
    %vm158 = vcmask 31744
    %v160 = vsel %vm158, %v152, 0
    %vm162 = vcmask 1043456
    %v164 = vsel %vm162, %v153, 0
    %166 = vmatpush.msra.mxu0 0.0
    %167 = vmatpush.msra.mxu0 0.0
    %168 = vmatpush.msra.mxu0 0.0
    %169 = vmatpush.msra.mxu0 0.0
    %170 = vmatpush.msra.mxu0 0.0
    %171 = vmatpush.msra.mxu0 0.0
    %172 = vmatpush.msra.mxu0 0.0
    %173 = vmatpush.msra.mxu0 0.0
    %174 = vmatpush.msra.mxu0 0.0
    %175 = vmatpush.msra.mxu0 0.0
    %176 = vmatpush.msra.mxu0 0.0
    %177 = vmatpush.msra.mxu0 0.0
    %178 = vmatpush.msra.mxu0 0.0
    %179 = vmatpush.msra.mxu0 0.0
    %180 = vmatpush.msra.mxu0 0.0
    %181 = vmatpush.msra.mxu0 %v164
    %182 = vmatmul.f32.gmra.mxu0 %v160
    %v183 = vpop.f32.mrf.mxu0
    %v184 = vadd.f32 %v156, %v183
    %185 = vdwg.mxu0
    %v186 = vmax.f32 %v184, 0.0
    %v187 = vld [vmem:[#allocation8] sm:$0xff]
    %v188 = vld [vmem:[#allocation8 + $0x8] sm:$0xff]
    %v189 = vld [vmem:[#allocation8 + $0x10] sm:$0xff]
    %v190 = vld [vmem:[#allocation8 + $0x18] sm:$0xff]
    %v191 = vld [vmem:[#allocation10] sm:$0x1]
    %v193 = vperm.slane %v191, 0
    %vm195 = vcmask 261120
    %v197 = vsel %vm195, %v186, 0
    %199 = vmatpush.msra.mxu0 0.0
    %200 = vmatpush.msra.mxu0 0.0
    %201 = vmatpush.msra.mxu0 0.0
    %202 = vmatpush.msra.mxu0 0.0
    %203 = vmatpush.msra.mxu0 0.0
    %204 = vmatpush.msra.mxu0 0.0
    %205 = vmatpush.msra.mxu0 0.0
    %206 = vmatpush.msra.mxu0 0.0
    %207 = vmatpush.msra.mxu0 0.0
    %208 = vmatpush.msra.mxu0 0.0
    %209 = vmatpush.msra.mxu0 0.0
    %210 = vmatpush.msra.mxu0 0.0
    %211 = vmatpush.msra.mxu0 %v190
    %212 = vmatpush.msra.mxu0 %v189
    %213 = vmatpush.msra.mxu0 %v188
    %214 = vmatpush.msra.mxu0 %v187
    %215 = vmatmul.f32.gmra.mxu0 %v197
    %v216 = vpop.f32.mrf.mxu0
    %v217 = vadd.f32 %v193, %v216
    %218 = vdwg.mxu0
    %s219 = scalar_lea.vmem [#allocation8], 32
    %v220 = vld [vmem:[%s219] sm:$0xff]
    %v221 = vld [vmem:[%s219 + $0x8] sm:$0xff]
    %v222 = vld [vmem:[%s219 + $0x10] sm:$0xff]
    %v223 = vld [vmem:[%s219 + $0x18] sm:$0xff]
    %s224 = scalar_lea.vmem [#allocation10], 1
    %v225 = vld [vmem:[%s224] sm:$0x1]
    %v227 = vperm.slane %v225, 0
    %229 = vmatpush.msra.mxu0 0.0
    %230 = vmatpush.msra.mxu0 0.0
    %231 = vmatpush.msra.mxu0 0.0
    %232 = vmatpush.msra.mxu0 0.0
    %233 = vmatpush.msra.mxu0 0.0
    %234 = vmatpush.msra.mxu0 0.0
    %235 = vmatpush.msra.mxu0 0.0
    %236 = vmatpush.msra.mxu0 0.0
    %237 = vmatpush.msra.mxu0 0.0
    %238 = vmatpush.msra.mxu0 0.0
    %239 = vmatpush.msra.mxu0 0.0
    %240 = vmatpush.msra.mxu0 0.0
    %241 = vmatpush.msra.mxu0 %v223
    %242 = vmatpush.msra.mxu0 %v222
    %243 = vmatpush.msra.mxu0 %v221
    %244 = vmatpush.msra.mxu0 %v220
    %245 = vmatmul.f32.gmra.mxu0 %v197
    %v246 = vpop.f32.mrf.mxu0
    %v247 = vadd.f32 %v227, %v246
    %248 = vdwg.mxu0
    %s249 = scalar_lea.vmem [#allocation8], 64
    %v250 = vld [vmem:[%s249] sm:$0xff]
    %v251 = vld [vmem:[%s249 + $0x8] sm:$0xff]
    %v252 = vld [vmem:[%s249 + $0x10] sm:$0xff]
    %v253 = vld [vmem:[%s249 + $0x18] sm:$0xff]
    %s254 = scalar_lea.vmem [#allocation10], 2
    %v255 = vld [vmem:[%s254] sm:$0x1]
    %v257 = vperm.slane %v255, 0
    %259 = vmatpush.msra.mxu0 0.0
    %260 = vmatpush.msra.mxu0 0.0
    %261 = vmatpush.msra.mxu0 0.0
    %262 = vmatpush.msra.mxu0 0.0
    %263 = vmatpush.msra.mxu0 0.0
    %264 = vmatpush.msra.mxu0 0.0
    %265 = vmatpush.msra.mxu0 0.0
    %266 = vmatpush.msra.mxu0 0.0
    %267 = vmatpush.msra.mxu0 0.0
    %268 = vmatpush.msra.mxu0 0.0
    %269 = vmatpush.msra.mxu0 0.0
    %270 = vmatpush.msra.mxu0 0.0
    %271 = vmatpush.msra.mxu0 %v253
    %272 = vmatpush.msra.mxu0 %v252
    %273 = vmatpush.msra.mxu0 %v251
    %274 = vmatpush.msra.mxu0 %v250
    %275 = vmatmul.f32.gmra.mxu0 %v197
    %v276 = vpop.f32.mrf.mxu0
    %v277 = vadd.f32 %v257, %v276
    %278 = vdwg.mxu0
    %s279 = scalar_lea.vmem [#allocation8], 96
    %v280 = vld [vmem:[%s279] sm:$0xff]
    %v281 = vld [vmem:[%s279 + $0x8] sm:$0xff]
    %v282 = vld [vmem:[%s279 + $0x10] sm:$0xff]
    %v283 = vld [vmem:[%s279 + $0x18] sm:$0xff]
    %s284 = scalar_lea.vmem [#allocation10], 3
    %v285 = vld [vmem:[%s284] sm:$0x1]
    %v287 = vperm.slane %v285, 0
    %289 = vmatpush.msra.mxu0 0.0
    %290 = vmatpush.msra.mxu0 0.0
    %291 = vmatpush.msra.mxu0 0.0
    %292 = vmatpush.msra.mxu0 0.0
    %293 = vmatpush.msra.mxu0 0.0
    %294 = vmatpush.msra.mxu0 0.0
    %295 = vmatpush.msra.mxu0 0.0
    %296 = vmatpush.msra.mxu0 0.0
    %297 = vmatpush.msra.mxu0 0.0
    %298 = vmatpush.msra.mxu0 0.0
    %299 = vmatpush.msra.mxu0 0.0
    %300 = vmatpush.msra.mxu0 0.0
    %301 = vmatpush.msra.mxu0 %v283
    %302 = vmatpush.msra.mxu0 %v282
    %303 = vmatpush.msra.mxu0 %v281
    %304 = vmatpush.msra.mxu0 %v280
    %305 = vmatmul.f32.gmra.mxu0 %v197
    %v306 = vpop.f32.mrf.mxu0
    %v307 = vadd.f32 %v287, %v306
    %308 = vdwg.mxu0
    %vm309 = vcmask 517120
    %v310 = vsel %vm309, %v217, 0.0
    %v311 = vrot.slane %v310, 4
    %v312 = vadd.f32 %v310, %v311
    %v313 = vrot.slane %v312, 2
    %v314 = vadd.f32 %v312, %v313
    %v315 = vrot.slane %v314, 1
    %v316 = vadd.f32 %v314, %v315
    %vm317 = vcmask 523264
    %v318 = vsel %vm317, %v316, 0.0
    %319 = vadd.xlane.f32.xlu0 %v318
    %v320 = vpop.xlane.xlu0 %319
    %v321 = vmul.f32 %v320, 0.0078125
    %v322 = vsub.f32 %v217, %v321
    %v323 = vmul.f32 %v322, %v322
    %v324 = vsel %vm309, %v323, 0.0
    %v325 = vrot.slane %v324, 4
    %v326 = vadd.f32 %v324, %v325
    %v327 = vrot.slane %v326, 2
    %v328 = vadd.f32 %v326, %v327
    %v329 = vrot.slane %v328, 1
    %v330 = vadd.f32 %v328, %v329
    %v331 = vsel %vm317, %v330, 0.0
    %332 = vadd.xlane.f32.xlu0 %v331
    %v333 = vpop.xlane.xlu0 %332
    %v334 = vmul.f32 %v333, 0.0078125
    %s335 = sld [smem:[#allocation12]]
    %v336 = vadd.f32 %v334, 1e-05
    %v337 = vrsqrt.pop %v336
    %v338 = vmul.f32 %v337, %v336
    %v339 = vmul.f32 %v338, %v337
    %v340 = vmul.f32 0.5, %v339
    %v341 = vsub.f32 1.5, %v340
    %v342 = vmul.f32 %v337, %v341
    %vm343 = vweird.f32 %v336
    %vm344 = vweird.f32 %v337
    %vm345 = vmor %vm343, %vm344
    %v346 = vsel %vm345, %v337, %v342
    %v347 = vstv %s335
    %v348 = vmul.f32 %v347, %v346
    %v349 = vmul.f32 %v322, %v348
    %s350 = sld [smem:[#allocation14]]
    %v351 = vstv %s350
    %v352 = vadd.f32 %v349, %v351
    %v353 = vmax.f32 %v352, 0.0
    %v354 = vsel %vm309, %v247, 0.0
    %v355 = vrot.slane %v354, 4
    %v356 = vadd.f32 %v354, %v355
    %v357 = vrot.slane %v356, 2
    %v358 = vadd.f32 %v356, %v357
    %v359 = vrot.slane %v358, 1
    %v360 = vadd.f32 %v358, %v359
    %v361 = vsel %vm317, %v360, 0.0
    %362 = vadd.xlane.f32.xlu0 %v361
    %v363 = vpop.xlane.xlu0 %362
    %v364 = vmul.f32 %v363, 0.0078125
    %v365 = vsub.f32 %v247, %v364
    %v366 = vmul.f32 %v365, %v365
    %v367 = vsel %vm309, %v366, 0.0
    %v368 = vrot.slane %v367, 4
    %v369 = vadd.f32 %v367, %v368
    %v370 = vrot.slane %v369, 2
    %v371 = vadd.f32 %v369, %v370
    %v372 = vrot.slane %v371, 1
    %v373 = vadd.f32 %v371, %v372
    %v374 = vsel %vm317, %v373, 0.0
    %375 = vadd.xlane.f32.xlu0 %v374
    %v376 = vpop.xlane.xlu0 %375
    %v377 = vmul.f32 %v376, 0.0078125
    %s378 = sld [smem:[#allocation12 + $0x1]]
    %v379 = vadd.f32 %v377, 1e-05
    %v380 = vrsqrt.pop %v379
    %v381 = vmul.f32 %v380, %v379
    %v382 = vmul.f32 %v381, %v380
    %v383 = vmul.f32 0.5, %v382
    %v384 = vsub.f32 1.5, %v383
    %v385 = vmul.f32 %v380, %v384
    %vm386 = vweird.f32 %v379
    %vm387 = vweird.f32 %v380
    %vm388 = vmor %vm386, %vm387
    %v389 = vsel %vm388, %v380, %v385
    %v390 = vstv %s378
    %v391 = vmul.f32 %v390, %v389
    %v392 = vmul.f32 %v365, %v391
    %s393 = sld [smem:[#allocation14 + $0x1]]
    %v394 = vstv %s393
    %v395 = vadd.f32 %v392, %v394
    %v396 = vmax.f32 %v395, 0.0
    %v397 = vsel %vm309, %v277, 0.0
    %v398 = vrot.slane %v397, 4
    %v399 = vadd.f32 %v397, %v398
    %v400 = vrot.slane %v399, 2
    %v401 = vadd.f32 %v399, %v400
    %v402 = vrot.slane %v401, 1
    %v403 = vadd.f32 %v401, %v402
    %v404 = vsel %vm317, %v403, 0.0
    %405 = vadd.xlane.f32.xlu0 %v404
    %v406 = vpop.xlane.xlu0 %405
    %v407 = vmul.f32 %v406, 0.0078125
    %v408 = vsub.f32 %v277, %v407
    %v409 = vmul.f32 %v408, %v408
    %v410 = vsel %vm309, %v409, 0.0
    %v411 = vrot.slane %v410, 4
    %v412 = vadd.f32 %v410, %v411
    %v413 = vrot.slane %v412, 2
    %v414 = vadd.f32 %v412, %v413
    %v415 = vrot.slane %v414, 1
    %v416 = vadd.f32 %v414, %v415
    %v417 = vsel %vm317, %v416, 0.0
    %418 = vadd.xlane.f32.xlu0 %v417
    %v419 = vpop.xlane.xlu0 %418
    %v420 = vmul.f32 %v419, 0.0078125
    %s421 = sld [smem:[#allocation12 + $0x2]]
    %v422 = vadd.f32 %v420, 1e-05
    %v423 = vrsqrt.pop %v422
    %v424 = vmul.f32 %v423, %v422
    %v425 = vmul.f32 %v424, %v423
    %v426 = vmul.f32 0.5, %v425
    %v427 = vsub.f32 1.5, %v426
    %v428 = vmul.f32 %v423, %v427
    %vm429 = vweird.f32 %v422
    %vm430 = vweird.f32 %v423
    %vm431 = vmor %vm429, %vm430
    %v432 = vsel %vm431, %v423, %v428
    %v433 = vstv %s421
    %v434 = vmul.f32 %v433, %v432
    %v435 = vmul.f32 %v408, %v434
    %s436 = sld [smem:[#allocation14 + $0x2]]
    %v437 = vstv %s436
    %v438 = vadd.f32 %v435, %v437
    %v439 = vmax.f32 %v438, 0.0
    %v440 = vsel %vm309, %v307, 0.0
    %v441 = vrot.slane %v440, 4
    %v442 = vadd.f32 %v440, %v441
    %v443 = vrot.slane %v442, 2
    %v444 = vadd.f32 %v442, %v443
    %v445 = vrot.slane %v444, 1
    %v446 = vadd.f32 %v444, %v445
    %v447 = vsel %vm317, %v446, 0.0
    %448 = vadd.xlane.f32.xlu0 %v447
    %v449 = vpop.xlane.xlu0 %448
    %v450 = vmul.f32 %v449, 0.0078125
    %v451 = vsub.f32 %v307, %v450
    %v452 = vmul.f32 %v451, %v451
    %v453 = vsel %vm309, %v452, 0.0
    %v454 = vrot.slane %v453, 4
    %v455 = vadd.f32 %v453, %v454
    %v456 = vrot.slane %v455, 2
    %v457 = vadd.f32 %v455, %v456
    %v458 = vrot.slane %v457, 1
    %v459 = vadd.f32 %v457, %v458
    %v460 = vsel %vm317, %v459, 0.0
    %461 = vadd.xlane.f32.xlu0 %v460
    %v462 = vpop.xlane.xlu0 %461
    %v463 = vmul.f32 %v462, 0.0078125
    %s464 = sld [smem:[#allocation12 + $0x3]]
    %v465 = vadd.f32 %v463, 1e-05
    %v466 = vrsqrt.pop %v465
    %v467 = vmul.f32 %v466, %v465
    %v468 = vmul.f32 %v467, %v466
    %v469 = vmul.f32 0.5, %v468
    %v470 = vsub.f32 1.5, %v469
    %v471 = vmul.f32 %v466, %v470
    %vm472 = vweird.f32 %v465
    %vm473 = vweird.f32 %v466
    %vm474 = vmor %vm472, %vm473
    %v475 = vsel %vm474, %v466, %v471
    %v476 = vstv %s464
    %v477 = vmul.f32 %v476, %v475
    %v478 = vmul.f32 %v451, %v477
    %s479 = sld [smem:[#allocation14 + $0x3]]
    %v480 = vstv %s479
    %v481 = vadd.f32 %v478, %v480
    %v482 = vmax.f32 %v481, 0.0
    %s483 = sld [smem:[#allocation11]]
    %v484 = vstv %s483
    %v485 = vmul.f32 %v353, %v484
    %s486 = sld [smem:[#allocation11 + $0x80]]
    %v487 = vstv %s486
    %v488 = vmul.f32 %v396, %v487
    %v489 = vadd.f32 %v485, %v488
    %s490 = sld [smem:[#allocation11 + $0x100]]
    %v491 = vstv %s490
    %v492 = vmul.f32 %v439, %v491
    %v493 = vadd.f32 %v489, %v492
    %s494 = sld [smem:[#allocation11 + $0x180]]
    %v495 = vstv %s494
    %v496 = vmul.f32 %v482, %v495
    %v497 = vadd.f32 %v493, %v496
    %s498 = sld [smem:[#allocation15]]
    %v499 = vstv %s498
    %v500 = vadd.f32 %v497, %v499
    %v501 = vxor.u32 %v500, 2147483648
    %v502 = vmul.f32 %v501, 1.442695
    %v503 = vpow.pop %v502
    %v504 = vadd.f32 %v503, 1.0
    %v505 = vrcp.pop %v504
    %v506 = vmul.f32 %v504, %v505
    %v507 = vsub.f32 1.0, %v506
    %v508 = vmul.f32 %v505, %v507
    %v509 = vadd.f32 %v505, %v508
    %vm510 = vweird.f32 %v504
    %vm511 = vweird.f32 %v505
    %vm512 = vmor %vm510, %vm511
    %v513 = vsel %vm512, %v505, %v509
    %v514 = vand.u32 2147483647, %v504
    %vm515 = vcmp.eq.f32.partialorder %v514, 8.507059e+37
    %v516 = vand.u32 %v504, 2147483648
    %v517 = vor.u32 1.1754944e-38, %v516
    %v518 = vsel %vm515, %v517, %v513
    %v519 = vmul.f32 1.0, %v518
    %520 = vst.msk [vmem:[%s9] sm:$0x3] %vm309, %v519
    %s521 = sld [smem:[#allocation11 + $0x1]]
    %v522 = vstv %s521
    %v523 = vmul.f32 %v353, %v522
    %s524 = sld [smem:[#allocation11 + $0x81]]
    %v525 = vstv %s524
    %v526 = vmul.f32 %v396, %v525
    %v527 = vadd.f32 %v523, %v526
    %s528 = sld [smem:[#allocation11 + $0x101]]
    %v529 = vstv %s528
    %v530 = vmul.f32 %v439, %v529
    %v531 = vadd.f32 %v527, %v530
    %s532 = sld [smem:[#allocation11 + $0x181]]
    %v533 = vstv %s532
    %v534 = vmul.f32 %v482, %v533
    %v535 = vadd.f32 %v531, %v534
    %s536 = sld [smem:[#allocation15]]
    %v537 = vstv %s536
    %v538 = vadd.f32 %v535, %v537
    %v539 = vxor.u32 %v538, 2147483648
    %v540 = vmul.f32 %v539, 1.442695
    %v541 = vpow.pop %v540
    %v542 = vadd.f32 %v541, 1.0
    %v543 = vrcp.pop %v542
    %v544 = vmul.f32 %v542, %v543
    %v545 = vsub.f32 1.0, %v544
    %v546 = vmul.f32 %v543, %v545
    %v547 = vadd.f32 %v543, %v546
    %vm548 = vweird.f32 %v542
    %vm549 = vweird.f32 %v543
    %vm550 = vmor %vm548, %vm549
    %v551 = vsel %vm550, %v543, %v547
    %v552 = vand.u32 2147483647, %v542
    %vm553 = vcmp.eq.f32.partialorder %v552, 8.507059e+37
    %v554 = vand.u32 %v542, 2147483648
    %v555 = vor.u32 1.1754944e-38, %v554
    %v556 = vsel %vm553, %v555, %v551
    %v557 = vmul.f32 1.0, %v556
    %s558 = scalar_lea.vmem %s9, 2
    %559 = vst.msk [vmem:[%s558] sm:$0x3] %vm309, %v557
    %s560 = sld [smem:[#allocation11 + $0x2]]
    %v561 = vstv %s560
    %v562 = vmul.f32 %v353, %v561
    %s563 = sld [smem:[#allocation11 + $0x82]]
    %v564 = vstv %s563
    %v565 = vmul.f32 %v396, %v564
    %v566 = vadd.f32 %v562, %v565
    %s567 = sld [smem:[#allocation11 + $0x102]]
    %v568 = vstv %s567
    %v569 = vmul.f32 %v439, %v568
    %v570 = vadd.f32 %v566, %v569
    %s571 = sld [smem:[#allocation11 + $0x182]]
    %v572 = vstv %s571
    %v573 = vmul.f32 %v482, %v572
    %v574 = vadd.f32 %v570, %v573
    %s575 = sld [smem:[#allocation15]]
    %v576 = vstv %s575
    %v577 = vadd.f32 %v574, %v576
    %v578 = vxor.u32 %v577, 2147483648
    %v579 = vmul.f32 %v578, 1.442695
    %v580 = vpow.pop %v579
    %v581 = vadd.f32 %v580, 1.0
    %v582 = vrcp.pop %v581
    %v583 = vmul.f32 %v581, %v582
    %v584 = vsub.f32 1.0, %v583
    %v585 = vmul.f32 %v582, %v584
    %v586 = vadd.f32 %v582, %v585
    %vm587 = vweird.f32 %v581
    %vm588 = vweird.f32 %v582
    %vm589 = vmor %vm587, %vm588
    %v590 = vsel %vm589, %v582, %v586
    %v591 = vand.u32 2147483647, %v581
    %vm592 = vcmp.eq.f32.partialorder %v591, 8.507059e+37
    %v593 = vand.u32 %v581, 2147483648
    %v594 = vor.u32 1.1754944e-38, %v593
    %v595 = vsel %vm592, %v594, %v590
    %v596 = vmul.f32 1.0, %v595
    %s597 = scalar_lea.vmem %s9, 4
    %598 = vst.msk [vmem:[%s597] sm:$0x3] %vm309, %v596
    %s599 = sld [smem:[#allocation11 + $0x3]]
    %v600 = vstv %s599
    %v601 = vmul.f32 %v353, %v600
    %s602 = sld [smem:[#allocation11 + $0x83]]
    %v603 = vstv %s602
    %v604 = vmul.f32 %v396, %v603
    %v605 = vadd.f32 %v601, %v604
    %s606 = sld [smem:[#allocation11 + $0x103]]
    %v607 = vstv %s606
    %v608 = vmul.f32 %v439, %v607
    %v609 = vadd.f32 %v605, %v608
    %s610 = sld [smem:[#allocation11 + $0x183]]
    %v611 = vstv %s610
    %v612 = vmul.f32 %v482, %v611
    %v613 = vadd.f32 %v609, %v612
    %s614 = sld [smem:[#allocation15]]
    %v615 = vstv %s614
    %v616 = vadd.f32 %v613, %v615
    %v617 = vxor.u32 %v616, 2147483648
    %v618 = vmul.f32 %v617, 1.442695
    %v619 = vpow.pop %v618
    %v620 = vadd.f32 %v619, 1.0
    %v621 = vrcp.pop %v620
    %v622 = vmul.f32 %v620, %v621
    %v623 = vsub.f32 1.0, %v622
    %v624 = vmul.f32 %v621, %v623
    %v625 = vadd.f32 %v621, %v624
    %vm626 = vweird.f32 %v620
    %vm627 = vweird.f32 %v621
    %vm628 = vmor %vm626, %vm627
    %v629 = vsel %vm628, %v621, %v625
    %v630 = vand.u32 2147483647, %v620
    %vm631 = vcmp.eq.f32.partialorder %v630, 8.507059e+37
    %v632 = vand.u32 %v620, 2147483648
    %v633 = vor.u32 1.1754944e-38, %v632
    %v634 = vsel %vm631, %v633, %v629
    %v635 = vmul.f32 1.0, %v634
    %s636 = scalar_lea.vmem %s9, 6
    %637 = vst.msk [vmem:[%s636] sm:$0x3] %vm309, %v635
    %s638 = sld [smem:[#allocation11 + $0x4]]
    %v639 = vstv %s638
    %v640 = vmul.f32 %v353, %v639
    %s641 = sld [smem:[#allocation11 + $0x84]]
    %v642 = vstv %s641
    %v643 = vmul.f32 %v396, %v642
    %v644 = vadd.f32 %v640, %v643
    %s645 = sld [smem:[#allocation11 + $0x104]]
    %v646 = vstv %s645
    %v647 = vmul.f32 %v439, %v646
    %v648 = vadd.f32 %v644, %v647
    %s649 = sld [smem:[#allocation11 + $0x184]]
    %v650 = vstv %s649
    %v651 = vmul.f32 %v482, %v650
    %v652 = vadd.f32 %v648, %v651
    %s653 = sld [smem:[#allocation15 + $0x1]]
    %v654 = vstv %s653
    %v655 = vadd.f32 %v652, %v654
    %v656 = vxor.u32 %v655, 2147483648
    %v657 = vmul.f32 %v656, 1.442695
    %v658 = vpow.pop %v657
    %v659 = vadd.f32 %v658, 1.0
    %v660 = vrcp.pop %v659
    %v661 = vmul.f32 %v659, %v660
    %v662 = vsub.f32 1.0, %v661
    %v663 = vmul.f32 %v660, %v662
    %v664 = vadd.f32 %v660, %v663
    %vm665 = vweird.f32 %v659
    %vm666 = vweird.f32 %v660
    %vm667 = vmor %vm665, %vm666
    %v668 = vsel %vm667, %v660, %v664
    %v669 = vand.u32 2147483647, %v659
    %vm670 = vcmp.eq.f32.partialorder %v669, 8.507059e+37
    %v671 = vand.u32 %v659, 2147483648
    %v672 = vor.u32 1.1754944e-38, %v671
    %v673 = vsel %vm670, %v672, %v668
    %v674 = vmul.f32 1.0, %v673
    %s675 = scalar_lea.vmem %s9, 8
    %676 = vst.msk [vmem:[%s675] sm:$0x3] %vm309, %v674
    %s677 = sld [smem:[#allocation11 + $0x5]]
    %v678 = vstv %s677
    %v679 = vmul.f32 %v353, %v678
    %s680 = sld [smem:[#allocation11 + $0x85]]
    %v681 = vstv %s680
    %v682 = vmul.f32 %v396, %v681
    %v683 = vadd.f32 %v679, %v682
    %s684 = sld [smem:[#allocation11 + $0x105]]
    %v685 = vstv %s684
    %v686 = vmul.f32 %v439, %v685
    %v687 = vadd.f32 %v683, %v686
    %s688 = sld [smem:[#allocation11 + $0x185]]
    %v689 = vstv %s688
    %v690 = vmul.f32 %v482, %v689
    %v691 = vadd.f32 %v687, %v690
    %s692 = sld [smem:[#allocation15 + $0x1]]
    %v693 = vstv %s692
    %v694 = vadd.f32 %v691, %v693
    %v695 = vxor.u32 %v694, 2147483648
    %v696 = vmul.f32 %v695, 1.442695
    %v697 = vpow.pop %v696
    %v698 = vadd.f32 %v697, 1.0
    %v699 = vrcp.pop %v698
    %v700 = vmul.f32 %v698, %v699
    %v701 = vsub.f32 1.0, %v700
    %v702 = vmul.f32 %v699, %v701
    %v703 = vadd.f32 %v699, %v702
    %vm704 = vweird.f32 %v698
    %vm705 = vweird.f32 %v699
    %vm706 = vmor %vm704, %vm705
    %v707 = vsel %vm706, %v699, %v703
    %v708 = vand.u32 2147483647, %v698
    %vm709 = vcmp.eq.f32.partialorder %v708, 8.507059e+37
    %v710 = vand.u32 %v698, 2147483648
    %v711 = vor.u32 1.1754944e-38, %v710
    %v712 = vsel %vm709, %v711, %v707
    %v713 = vmul.f32 1.0, %v712
    %s714 = scalar_lea.vmem %s9, 10
    %715 = vst.msk [vmem:[%s714] sm:$0x3] %vm309, %v713
    %s716 = sld [smem:[#allocation11 + $0x6]]
    %v717 = vstv %s716
    %v718 = vmul.f32 %v353, %v717
    %s719 = sld [smem:[#allocation11 + $0x86]]
    %v720 = vstv %s719
    %v721 = vmul.f32 %v396, %v720
    %v722 = vadd.f32 %v718, %v721
    %s723 = sld [smem:[#allocation11 + $0x106]]
    %v724 = vstv %s723
    %v725 = vmul.f32 %v439, %v724
    %v726 = vadd.f32 %v722, %v725
    %s727 = sld [smem:[#allocation11 + $0x186]]
    %v728 = vstv %s727
    %v729 = vmul.f32 %v482, %v728
    %v730 = vadd.f32 %v726, %v729
    %s731 = sld [smem:[#allocation15 + $0x1]]
    %v732 = vstv %s731
    %v733 = vadd.f32 %v730, %v732
    %v734 = vxor.u32 %v733, 2147483648
    %v735 = vmul.f32 %v734, 1.442695
    %v736 = vpow.pop %v735
    %v737 = vadd.f32 %v736, 1.0
    %v738 = vrcp.pop %v737
    %v739 = vmul.f32 %v737, %v738
    %v740 = vsub.f32 1.0, %v739
    %v741 = vmul.f32 %v738, %v740
    %v742 = vadd.f32 %v738, %v741
    %vm743 = vweird.f32 %v737
    %vm744 = vweird.f32 %v738
    %vm745 = vmor %vm743, %vm744
    %v746 = vsel %vm745, %v738, %v742
    %v747 = vand.u32 2147483647, %v737
    %vm748 = vcmp.eq.f32.partialorder %v747, 8.507059e+37
    %v749 = vand.u32 %v737, 2147483648
    %v750 = vor.u32 1.1754944e-38, %v749
    %v751 = vsel %vm748, %v750, %v746
    %v752 = vmul.f32 1.0, %v751
    %s753 = scalar_lea.vmem %s9, 12
    %754 = vst.msk [vmem:[%s753] sm:$0x3] %vm309, %v752
    %s755 = sld [smem:[#allocation11 + $0x7]]
    %v756 = vstv %s755
    %v757 = vmul.f32 %v353, %v756
    %s758 = sld [smem:[#allocation11 + $0x87]]
    %v759 = vstv %s758
    %v760 = vmul.f32 %v396, %v759
    %v761 = vadd.f32 %v757, %v760
    %s762 = sld [smem:[#allocation11 + $0x107]]
    %v763 = vstv %s762
    %v764 = vmul.f32 %v439, %v763
    %v765 = vadd.f32 %v761, %v764
    %s766 = sld [smem:[#allocation11 + $0x187]]
    %v767 = vstv %s766
    %v768 = vmul.f32 %v482, %v767
    %v769 = vadd.f32 %v765, %v768
    %s770 = sld [smem:[#allocation15 + $0x1]]
    %v771 = vstv %s770
    %v772 = vadd.f32 %v769, %v771
    %v773 = vxor.u32 %v772, 2147483648
    %v774 = vmul.f32 %v773, 1.442695
    %v775 = vpow.pop %v774
    %v776 = vadd.f32 %v775, 1.0
    %v777 = vrcp.pop %v776
    %v778 = vmul.f32 %v776, %v777
    %v779 = vsub.f32 1.0, %v778
    %v780 = vmul.f32 %v777, %v779
    %v781 = vadd.f32 %v777, %v780
    %vm782 = vweird.f32 %v776
    %vm783 = vweird.f32 %v777
    %vm784 = vmor %vm782, %vm783
    %v785 = vsel %vm784, %v777, %v781
    %v786 = vand.u32 2147483647, %v776
    %vm787 = vcmp.eq.f32.partialorder %v786, 8.507059e+37
    %v788 = vand.u32 %v776, 2147483648
    %v789 = vor.u32 1.1754944e-38, %v788
    %v790 = vsel %vm787, %v789, %v785
    %v791 = vmul.f32 1.0, %v790
    %s792 = scalar_lea.vmem %s9, 14
    %793 = vst.msk [vmem:[%s792] sm:$0x3] %vm309, %v791
    %s794 = sld [smem:[#allocation11 + $0x8]]
    %v795 = vstv %s794
    %v796 = vmul.f32 %v353, %v795
    %s797 = sld [smem:[#allocation11 + $0x88]]
    %v798 = vstv %s797
    %v799 = vmul.f32 %v396, %v798
    %v800 = vadd.f32 %v796, %v799
    %s801 = sld [smem:[#allocation11 + $0x108]]
    %v802 = vstv %s801
    %v803 = vmul.f32 %v439, %v802
    %v804 = vadd.f32 %v800, %v803
    %s805 = sld [smem:[#allocation11 + $0x188]]
    %v806 = vstv %s805
    %v807 = vmul.f32 %v482, %v806
    %v808 = vadd.f32 %v804, %v807
    %s809 = sld [smem:[#allocation15 + $0x2]]
    %v810 = vstv %s809
    %v811 = vadd.f32 %v808, %v810
    %v812 = vxor.u32 %v811, 2147483648
    %v813 = vmul.f32 %v812, 1.442695
    %v814 = vpow.pop %v813
    %v815 = vadd.f32 %v814, 1.0
    %v816 = vrcp.pop %v815
    %v817 = vmul.f32 %v815, %v816
    %v818 = vsub.f32 1.0, %v817
    %v819 = vmul.f32 %v816, %v818
    %v820 = vadd.f32 %v816, %v819
    %vm821 = vweird.f32 %v815
    %vm822 = vweird.f32 %v816
    %vm823 = vmor %vm821, %vm822
    %v824 = vsel %vm823, %v816, %v820
    %v825 = vand.u32 2147483647, %v815
    %vm826 = vcmp.eq.f32.partialorder %v825, 8.507059e+37
    %v827 = vand.u32 %v815, 2147483648
    %v828 = vor.u32 1.1754944e-38, %v827
    %v829 = vsel %vm826, %v828, %v824
    %v830 = vmul.f32 1.0, %v829
    %s831 = scalar_lea.vmem %s9, 16
    %832 = vst.msk [vmem:[%s831] sm:$0x3] %vm309, %v830
    %s833 = sld [smem:[#allocation11 + $0x9]]
    %v834 = vstv %s833
    %v835 = vmul.f32 %v353, %v834
    %s836 = sld [smem:[#allocation11 + $0x89]]
    %v837 = vstv %s836
    %v838 = vmul.f32 %v396, %v837
    %v839 = vadd.f32 %v835, %v838
    %s840 = sld [smem:[#allocation11 + $0x109]]
    %v841 = vstv %s840
    %v842 = vmul.f32 %v439, %v841
    %v843 = vadd.f32 %v839, %v842
    %s844 = sld [smem:[#allocation11 + $0x189]]
    %v845 = vstv %s844
    %v846 = vmul.f32 %v482, %v845
    %v847 = vadd.f32 %v843, %v846
    %s848 = sld [smem:[#allocation15 + $0x2]]
    %v849 = vstv %s848
    %v850 = vadd.f32 %v847, %v849
    %v851 = vxor.u32 %v850, 2147483648
    %v852 = vmul.f32 %v851, 1.442695
    %v853 = vpow.pop %v852
    %v854 = vadd.f32 %v853, 1.0
    %v855 = vrcp.pop %v854
    %v856 = vmul.f32 %v854, %v855
    %v857 = vsub.f32 1.0, %v856
    %v858 = vmul.f32 %v855, %v857
    %v859 = vadd.f32 %v855, %v858
    %vm860 = vweird.f32 %v854
    %vm861 = vweird.f32 %v855
    %vm862 = vmor %vm860, %vm861
    %v863 = vsel %vm862, %v855, %v859
    %v864 = vand.u32 2147483647, %v854
    %vm865 = vcmp.eq.f32.partialorder %v864, 8.507059e+37
    %v866 = vand.u32 %v854, 2147483648
    %v867 = vor.u32 1.1754944e-38, %v866
    %v868 = vsel %vm865, %v867, %v863
    %v869 = vmul.f32 1.0, %v868
    %s870 = scalar_lea.vmem %s9, 18
    %871 = vst.msk [vmem:[%s870] sm:$0x3] %vm309, %v869
    %s872 = sld [smem:[#allocation11 + $0xa]]
    %v873 = vstv %s872
    %v874 = vmul.f32 %v353, %v873
    %s875 = sld [smem:[#allocation11 + $0x8a]]
    %v876 = vstv %s875
    %v877 = vmul.f32 %v396, %v876
    %v878 = vadd.f32 %v874, %v877
    %s879 = sld [smem:[#allocation11 + $0x10a]]
    %v880 = vstv %s879
    %v881 = vmul.f32 %v439, %v880
    %v882 = vadd.f32 %v878, %v881
    %s883 = sld [smem:[#allocation11 + $0x18a]]
    %v884 = vstv %s883
    %v885 = vmul.f32 %v482, %v884
    %v886 = vadd.f32 %v882, %v885
    %s887 = sld [smem:[#allocation15 + $0x2]]
    %v888 = vstv %s887
    %v889 = vadd.f32 %v886, %v888
    %v890 = vxor.u32 %v889, 2147483648
    %v891 = vmul.f32 %v890, 1.442695
    %v892 = vpow.pop %v891
    %v893 = vadd.f32 %v892, 1.0
    %v894 = vrcp.pop %v893
    %v895 = vmul.f32 %v893, %v894
    %v896 = vsub.f32 1.0, %v895
    %v897 = vmul.f32 %v894, %v896
    %v898 = vadd.f32 %v894, %v897
    %vm899 = vweird.f32 %v893
    %vm900 = vweird.f32 %v894
    %vm901 = vmor %vm899, %vm900
    %v902 = vsel %vm901, %v894, %v898
    %v903 = vand.u32 2147483647, %v893
    %vm904 = vcmp.eq.f32.partialorder %v903, 8.507059e+37
    %v905 = vand.u32 %v893, 2147483648
    %v906 = vor.u32 1.1754944e-38, %v905
    %v907 = vsel %vm904, %v906, %v902
    %v908 = vmul.f32 1.0, %v907
    %s909 = scalar_lea.vmem %s9, 20
    %910 = vst.msk [vmem:[%s909] sm:$0x3] %vm309, %v908
    %s911 = sld [smem:[#allocation11 + $0xb]]
    %v912 = vstv %s911
    %v913 = vmul.f32 %v353, %v912
    %s914 = sld [smem:[#allocation11 + $0x8b]]
    %v915 = vstv %s914
    %v916 = vmul.f32 %v396, %v915
    %v917 = vadd.f32 %v913, %v916
    %s918 = sld [smem:[#allocation11 + $0x10b]]
    %v919 = vstv %s918
    %v920 = vmul.f32 %v439, %v919
    %v921 = vadd.f32 %v917, %v920
    %s922 = sld [smem:[#allocation11 + $0x18b]]
    %v923 = vstv %s922
    %v924 = vmul.f32 %v482, %v923
    %v925 = vadd.f32 %v921, %v924
    %s926 = sld [smem:[#allocation15 + $0x2]]
    %v927 = vstv %s926
    %v928 = vadd.f32 %v925, %v927
    %v929 = vxor.u32 %v928, 2147483648
    %v930 = vmul.f32 %v929, 1.442695
    %v931 = vpow.pop %v930
    %v932 = vadd.f32 %v931, 1.0
    %v933 = vrcp.pop %v932
    %v934 = vmul.f32 %v932, %v933
    %v935 = vsub.f32 1.0, %v934
    %v936 = vmul.f32 %v933, %v935
    %v937 = vadd.f32 %v933, %v936
    %vm938 = vweird.f32 %v932
    %vm939 = vweird.f32 %v933
    %vm940 = vmor %vm938, %vm939
    %v941 = vsel %vm940, %v933, %v937
    %v942 = vand.u32 2147483647, %v932
    %vm943 = vcmp.eq.f32.partialorder %v942, 8.507059e+37
    %v944 = vand.u32 %v932, 2147483648
    %v945 = vor.u32 1.1754944e-38, %v944
    %v946 = vsel %vm943, %v945, %v941
    %v947 = vmul.f32 1.0, %v946
    %s948 = scalar_lea.vmem %s9, 22
    %949 = vst.msk [vmem:[%s948] sm:$0x3] %vm309, %v947
    // Predicated region
    $region74: #{fwd.1} parent=1 // pred_check
      _
    $region75: #{fwd.1} parent=1 // pred_check_branch
      %951 = sbr.rel (0) target = $region77
    $region76: #{fwd.1} parent=1 // pred_region
      _
    $region77: #{fwd.1} parent=1 // pred_fallthru
      _
    // Predicated region
    $region78: #{fwd.1} parent=1 // pred_check
      _
    $region79: #{fwd.1} parent=1 // pred_check_branch
      %953 = sbr.rel (0) target = $region81
    $region80: #{fwd.1} parent=1 // pred_region
      _
    $region81: #{fwd.1} parent=1 // pred_fallthru
      _
    %954 = vsyncpa [#allocation3], 1
    %955 = vsyncpa [#allocation6], 1
    %956 = vsyncpa [#allocation9], 1
    %957 = vsyncpa [#allocation4], 1
    %958 = vsyncpa [#allocation13], 1
    %959 = vsyncpa [#allocation16], 1

</llo_original>
